<compile_context>
chip_gen: v7x
topology: tpu7x:2x2x1
jax: 0.10.0
libtpu: 0.0.40
codegen_flags: <defaults>
</compile_context>

<pallas_src>
import jax
import jax.numpy as jnp
from jax.experimental import pallas as pl
from jax.experimental.pallas import tpu as pltpu


# ---------------------------------------------------------------------------
# Model hyper-parameters (small, consistent with the module's forward)
# ---------------------------------------------------------------------------
N = 2              # batch
S = 8              # sequence length
E = 32             # embedding_size
HEADS = 4          # heads
D = E // HEADS     # head_dim
HN = HEADS * N     # heads folded into batch
EXP = 2            # forward_expansion
HID = EXP * E      # FFN hidden
EPS = 1e-5         # LayerNorm eps (PyTorch default)
NS = N * S
SCALE = 1.0 / (E ** 0.5)   # tutorial divides energy by sqrt(embed_size)

# ---- row map of the packed parameter slab (all offsets sublane-tile aligned) ----
ROW_WBLK = 0              # 24 rows, lanes [0:24)  : blockdiag(wv.T, wk.T, wq.T*scale)
ROW_WFC = 24              # 32 rows, lanes [0:32)  : fc_out.weight.T
ROW_W1T = 56              # 32 rows, lanes [0:64)  : ff1.weight.T
ROW_W2T = 88              # 64 rows, lanes [0:32)  : ff2.weight.T
ROW_VEC = 152             # 7 rows : bfc, ln1w, ln1b, b1(64 lanes), b2, ln2w, ln2b
PROWS = 160               # padded to a multiple of 8


def _layernorm(x, w, b):
    mu = jnp.mean(x, axis=-1, keepdims=True)
    var = jnp.mean(jnp.square(x - mu), axis=-1, keepdims=True)
    return (x - mu) * jax.lax.rsqrt(var + EPS) * w + b


def transformer_block_kernel(vkq_ref, q_ref, mask_ref, p_ref, out_ref):
    f32 = jnp.float32
    bf16 = jnp.bfloat16

    # ---- static slices out of the packed parameter slab ----
    wblk = p_ref[ROW_WBLK:ROW_WBLK + 3 * D, 0:3 * D].astype(bf16)            # (24,24)
    wfc_h = p_ref[ROW_WFC:ROW_WFC + E, 0:E].reshape(HEADS, D, E).astype(bf16)  # (4,8,32)
    w1t = p_ref[ROW_W1T:ROW_W1T + E, 0:HID].astype(bf16)                     # (32,64)
    w2t = p_ref[ROW_W2T:ROW_W2T + HID, 0:E].astype(bf16)                     # (64,32)
    bfc = p_ref[ROW_VEC + 0:ROW_VEC + 1, 0:E]                                # (1,32)
    ln1w = p_ref[ROW_VEC + 1:ROW_VEC + 2, 0:E]
    ln1b = p_ref[ROW_VEC + 2:ROW_VEC + 3, 0:E]
    b1 = p_ref[ROW_VEC + 3:ROW_VEC + 4, 0:HID]                               # (1,64)
    b2 = p_ref[ROW_VEC + 4:ROW_VEC + 5, 0:E]
    ln2w = p_ref[ROW_VEC + 5:ROW_VEC + 6, 0:E]
    ln2b = p_ref[ROW_VEC + 6:ROW_VEC + 7, 0:E]

    # ---- fused V/K/Q projection: single (H*N*S, 3D) @ (3D, 3D) matmul ----
    x = vkq_ref[...].reshape(HN * S, 3 * D).astype(bf16)
    y = jnp.dot(x, wblk, preferred_element_type=f32).reshape(HN, S, 3 * D)
    vp = y[:, :, 0:D]            # (HN, S, D) projected values
    kp = y[:, :, D:2 * D]        # (HN, S, D) projected keys
    qp = y[:, :, 2 * D:3 * D]    # (HN, S, D) projected queries (pre-scaled by 1/sqrt(E))

    # ---- attention for all heads at once (heads live in the batch dim) ----
    energy = jnp.einsum('bqd,bkd->bqk', qp.astype(bf16), kp.astype(bf16),
                        preferred_element_type=f32)                    # (HN, S, S)
    # masked_fill(-1e20) then /sqrt(E)  ==  add -1e20/sqrt(E) to the pre-scaled energy
    bias = jnp.where(mask_ref[...] == 0.0, f32(-1e20 * SCALE), f32(0.0))   # (N, S, S)
    energy = (energy.reshape(HEADS, N, S, S) + bias[None]).reshape(HN, S, S)

    e_max = jnp.max(energy, axis=-1, keepdims=True)
    p = jnp.exp(energy - e_max)
    p = p / jnp.sum(p, axis=-1, keepdims=True)        # exact softmax (f32)

    hv = jnp.einsum('bqk,bkd->bqd', p.astype(bf16), vp.astype(bf16),
                    preferred_element_type=f32)                        # (HN, S, D)

    # ---- fc_out folded per head: one batched matmul + leading-axis sum (no concat) ----
    hv_r = hv.reshape(HEADS, NS, D).astype(bf16)                       # (4, 16, 8)
    attn = jnp.sum(jnp.einsum('hmd,hde->hme', hv_r, wfc_h,
                              preferred_element_type=f32), axis=0) + bfc   # (NS, E)

    # ---- residual + norm1 (dropout is identity at eval time) ----
    # TODO(synk): training-mode dropout (RNG mask + 1/(1-p) scaling) not implemented.
    x1 = _layernorm(attn + q_ref[...], ln1w, ln1b)                     # (NS, E), f32

    # ---- feed-forward: Linear -> ReLU -> Linear ----
    h1 = jnp.dot(x1.astype(bf16), w1t, preferred_element_type=f32) + b1
    h1 = jnp.maximum(h1, 0.0)
    ff = jnp.dot(h1.astype(bf16), w2t, preferred_element_type=f32) + b2

    # ---- residual + norm2, single full store ----
    out_ref[...] = _layernorm(ff + x1, ln2w, ln2b).astype(out_ref.dtype)


def pack_params(params):
    """One-time, host-side parameter packing into a single lane-padded slab."""
    (wv, wk, wq, wfc, bfc, ln1w, ln1b, w1, b1, w2, b2, ln2w, ln2b) = params
    wblk = jnp.zeros((3 * D, 3 * D), jnp.float32)
    wblk = wblk.at[0:D, 0:D].set(wv.T)
    wblk = wblk.at[D:2 * D, D:2 * D].set(wk.T)
    wblk = wblk.at[2 * D:3 * D, 2 * D:3 * D].set(wq.T * jnp.float32(SCALE))

    slab = jnp.zeros((PROWS, 128), jnp.float32)
    slab = slab.at[ROW_WBLK:ROW_WBLK + 3 * D, 0:3 * D].set(wblk)
    slab = slab.at[ROW_WFC:ROW_WFC + E, 0:E].set(wfc.T)
    slab = slab.at[ROW_W1T:ROW_W1T + E, 0:HID].set(w1.T)
    slab = slab.at[ROW_W2T:ROW_W2T + HID, 0:E].set(w2.T)
    slab = slab.at[ROW_VEC + 0, 0:E].set(bfc.reshape(E))
    slab = slab.at[ROW_VEC + 1, 0:E].set(ln1w.reshape(E))
    slab = slab.at[ROW_VEC + 2, 0:E].set(ln1b.reshape(E))
    slab = slab.at[ROW_VEC + 3, 0:HID].set(b1.reshape(HID))
    slab = slab.at[ROW_VEC + 4, 0:E].set(b2.reshape(E))
    slab = slab.at[ROW_VEC + 5, 0:E].set(ln2w.reshape(E))
    slab = slab.at[ROW_VEC + 6, 0:E].set(ln2b.reshape(E))
    return slab


def transformer_block(value, key, query, mask, param_slab):
    """Per-call path: only unavoidable activation layout packing + one pallas_call."""
    def to_heads(x):                     # (N, S, E) -> (HEADS, N, S, D), head-major
        return x.reshape(N, S, HEADS, D).transpose(2, 0, 1, 3)

    # fused-QKV activation slab: lanes = [v_head | k_head | q_head]
    vkq = jnp.concatenate([to_heads(value), to_heads(key), to_heads(query)],
                          axis=-1).reshape(HN, S, 3 * D)            # (8, 8, 24)
    q_flat = query.reshape(NS, E)                                   # (16, 32)

    vmem = pl.BlockSpec(memory_space=pltpu.MemorySpace.VMEM)
    # NOTE: the whole (2,8,32) problem is one gridless invocation.  At realistic
    # sizes add a token-tile grid with dimension_semantics=("parallel", ...) so
    # both v7x TensorCores are used and tiles fit its 64 MiB VMEM.
    out_flat = pl.pallas_call(
        transformer_block_kernel,
        out_shape=jax.ShapeDtypeStruct((NS, E), jnp.float32),
        in_specs=[vmem, vmem, vmem, vmem],
        out_specs=vmem,
    )(vkq, q_flat, mask, param_slab)
    return out_flat.reshape(N, S, E)


def init_params(key):
    ks = jax.random.split(key, 8)
    scale = 0.02
    wv = scale * jax.random.normal(ks[0], (D, D), jnp.float32)
    wk = scale * jax.random.normal(ks[1], (D, D), jnp.float32)
    wq = scale * jax.random.normal(ks[2], (D, D), jnp.float32)
    wfc = scale * jax.random.normal(ks[3], (E, E), jnp.float32)
    bfc = jnp.zeros((1, E), jnp.float32)
    ln1w = jnp.ones((1, E), jnp.float32)
    ln1b = jnp.zeros((1, E), jnp.float32)
    w1 = scale * jax.random.normal(ks[4], (HID, E), jnp.float32)
    b1 = jnp.zeros((1, HID), jnp.float32)
    w2 = scale * jax.random.normal(ks[5], (E, HID), jnp.float32)
    b2 = jnp.zeros((1, E), jnp.float32)
    ln2w = jnp.ones((1, E), jnp.float32)
    ln2b = jnp.zeros((1, E), jnp.float32)
    return (wv, wk, wq, wfc, bfc, ln1w, ln1b, w1, b1, w2, b2, ln2w, ln2b)


if __name__ == "__main__":
    root = jax.random.PRNGKey(0)
    k_v, k_k, k_q, k_p = jax.random.split(root, 4)

    value = jax.random.normal(k_v, (N, S, E), jnp.float32)
    keyt = jax.random.normal(k_k, (N, S, E), jnp.float32)
    query = jax.random.normal(k_q, (N, S, E), jnp.float32)
    mask = jnp.ones((N, S, S), jnp.float32)    # all-ones -> no masking

    params = init_params(k_p)
    param_slab = pack_params(params)           # packed ONCE, outside the call path

    fn = jax.jit(transformer_block)
    out = fn(value, keyt, query, mask, param_slab)
    jax.block_until_ready(out)
    assert out.shape == (N, S, E)
    print("KERNEL_OK")
</pallas_src>

<mosaic_0001>
module attributes {stable_mosaic.version = 11 : i64} {
  func.func @transformer_block_kernel(%arg0: memref<8x8x24xf32, #tpu.memory_space<vmem>>, %arg1: memref<16x32xf32, #tpu.memory_space<vmem>>, %arg2: memref<2x8x8xf32, #tpu.memory_space<vmem>>, %arg3: memref<160x128xf32, #tpu.memory_space<vmem>>, %arg4: memref<16x32xf32, #tpu.memory_space<vmem>>) attributes {dimension_semantics = [], scalar_prefetch = 0 : i64, scratch_operands = 0 : i64, tpu.core_type = #tpu.core_type<tc>} {
    %c0 = arith.constant 0 : index
    %c0_0 = arith.constant 0 : index
    %0 = vector.load %arg3[%c0, %c0_0] : memref<160x128xf32, #tpu.memory_space<vmem>>, vector<24x24xf32>
    %1 = arith.truncf %0 : vector<24x24xf32> to vector<24x24xbf16>
    %c24 = arith.constant 24 : index
    %c0_1 = arith.constant 0 : index
    %2 = vector.load %arg3[%c24, %c0_1] : memref<160x128xf32, #tpu.memory_space<vmem>>, vector<32x32xf32>
    %3 = vector.shape_cast %2 : vector<32x32xf32> to vector<4x8x32xf32>
    %4 = arith.truncf %3 : vector<4x8x32xf32> to vector<4x8x32xbf16>
    %c56 = arith.constant 56 : index
    %c0_2 = arith.constant 0 : index
    %5 = vector.load %arg3[%c56, %c0_2] : memref<160x128xf32, #tpu.memory_space<vmem>>, vector<32x64xf32>
    %6 = arith.truncf %5 : vector<32x64xf32> to vector<32x64xbf16>
    %c88 = arith.constant 88 : index
    %c0_3 = arith.constant 0 : index
    %7 = vector.load %arg3[%c88, %c0_3] : memref<160x128xf32, #tpu.memory_space<vmem>>, vector<64x32xf32>
    %8 = arith.truncf %7 : vector<64x32xf32> to vector<64x32xbf16>
    %c152 = arith.constant 152 : index
    %c0_4 = arith.constant 0 : index
    %9 = vector.load %arg3[%c152, %c0_4] : memref<160x128xf32, #tpu.memory_space<vmem>>, vector<1x32xf32>
    %c153 = arith.constant 153 : index
    %c0_5 = arith.constant 0 : index
    %10 = vector.load %arg3[%c153, %c0_5] : memref<160x128xf32, #tpu.memory_space<vmem>>, vector<1x32xf32>
    %c154 = arith.constant 154 : index
    %c0_6 = arith.constant 0 : index
    %11 = vector.load %arg3[%c154, %c0_6] : memref<160x128xf32, #tpu.memory_space<vmem>>, vector<1x32xf32>
    %c155 = arith.constant 155 : index
    %c0_7 = arith.constant 0 : index
    %12 = vector.load %arg3[%c155, %c0_7] : memref<160x128xf32, #tpu.memory_space<vmem>>, vector<1x64xf32>
    %c156 = arith.constant 156 : index
    %c0_8 = arith.constant 0 : index
    %13 = vector.load %arg3[%c156, %c0_8] : memref<160x128xf32, #tpu.memory_space<vmem>>, vector<1x32xf32>
    %c157 = arith.constant 157 : index
    %c0_9 = arith.constant 0 : index
    %14 = vector.load %arg3[%c157, %c0_9] : memref<160x128xf32, #tpu.memory_space<vmem>>, vector<1x32xf32>
    %c158 = arith.constant 158 : index
    %c0_10 = arith.constant 0 : index
    %15 = vector.load %arg3[%c158, %c0_10] : memref<160x128xf32, #tpu.memory_space<vmem>>, vector<1x32xf32>
    %c0_11 = arith.constant 0 : index
    %c0_12 = arith.constant 0 : index
    %c0_13 = arith.constant 0 : index
    %16 = vector.load %arg0[%c0_11, %c0_12, %c0_13] : memref<8x8x24xf32, #tpu.memory_space<vmem>>, vector<8x8x24xf32>
    %17 = vector.shape_cast %16 : vector<8x8x24xf32> to vector<64x24xf32>
    %18 = arith.truncf %17 : vector<64x24xf32> to vector<64x24xbf16>
    %cst = arith.constant dense<0.000000e+00> : vector<64x24xf32>
    %19 = tpu.matmul %18, %1, %cst {dimension_numbers = #tpu.dot_dimension_numbers<[1], [0], [0], [1], [0, 0, 1, 1], [], []>} : vector<64x24xbf16>, vector<24x24xbf16>, vector<64x24xf32> -> vector<64x24xf32>
    %20 = vector.shape_cast %19 : vector<64x24xf32> to vector<8x8x24xf32>
    %21 = vector.extract_strided_slice %20 {offsets = [0, 0, 0], sizes = [8, 8, 8], strides = [1, 1, 1]} : vector<8x8x24xf32> to vector<8x8x8xf32>
    %22 = vector.extract_strided_slice %20 {offsets = [0, 0, 8], sizes = [8, 8, 8], strides = [1, 1, 1]} : vector<8x8x24xf32> to vector<8x8x8xf32>
    %23 = vector.extract_strided_slice %20 {offsets = [0, 0, 16], sizes = [8, 8, 8], strides = [1, 1, 1]} : vector<8x8x24xf32> to vector<8x8x8xf32>
    %24 = arith.truncf %23 : vector<8x8x8xf32> to vector<8x8x8xbf16>
    %25 = arith.truncf %22 : vector<8x8x8xf32> to vector<8x8x8xbf16>
    "tpu.trace_start"() <{level = 10 : i32, message = "bqd,bkd->bqk"}> : () -> ()
    %cst_14 = arith.constant dense<0.000000e+00> : vector<8x8x8xf32>
    %26 = tpu.matmul %24, %25, %cst_14 {dimension_numbers = #tpu.dot_dimension_numbers<[2], [2], [1], [1], [0, 0, 0, 1, 1, 1], [0], [0]>} : vector<8x8x8xbf16>, vector<8x8x8xbf16>, vector<8x8x8xf32> -> vector<8x8x8xf32>
    "tpu.trace_stop"() : () -> ()
    %c0_15 = arith.constant 0 : index
    %c0_16 = arith.constant 0 : index
    %c0_17 = arith.constant 0 : index
    %27 = vector.load %arg2[%c0_15, %c0_16, %c0_17] : memref<2x8x8xf32, #tpu.memory_space<vmem>>, vector<2x8x8xf32>
    %cst_18 = arith.constant 0.000000e+00 : f32
    %28 = vector.broadcast %cst_18 : f32 to vector<2x8x8xf32>
    %29 = arith.cmpf oeq, %27, %28 : vector<2x8x8xf32>
    %cst_19 = arith.constant -1.76776698E+19 : f32
    %cst_20 = arith.constant 0.000000e+00 : f32
    %30 = vector.broadcast %cst_19 : f32 to vector<2x8x8xf32>
    %31 = vector.broadcast %cst_20 : f32 to vector<2x8x8xf32>
    %32 = arith.select %29, %30, %31 : vector<2x8x8xi1>, vector<2x8x8xf32>
    %33 = vector.shape_cast %26 : vector<8x8x8xf32> to vector<4x2x8x8xf32>
    %34 = vector.shape_cast %32 : vector<2x8x8xf32> to vector<1x2x8x8xf32>
    %35 = vector.broadcast %34 : vector<1x2x8x8xf32> to vector<4x2x8x8xf32>
    %36 = arith.addf %33, %35 : vector<4x2x8x8xf32>
    %37 = vector.shape_cast %36 : vector<4x2x8x8xf32> to vector<8x8x8xf32>
    %cst_21 = arith.constant dense<0xFF800000> : vector<8x8xf32>
    %38 = vector.multi_reduction <maximumf>, %37, %cst_21 [2] : vector<8x8x8xf32> to vector<8x8xf32>
    %39 = vector.shape_cast %38 : vector<8x8xf32> to vector<8x8x1xf32>
    %40 = vector.broadcast %39 : vector<8x8x1xf32> to vector<8x8x8xf32>
    %41 = arith.subf %37, %40 : vector<8x8x8xf32>
    %42 = math.exp %41 : vector<8x8x8xf32>
    %cst_22 = arith.constant dense<0.000000e+00> : vector<8x8xf32>
    %43 = vector.multi_reduction <add>, %42, %cst_22 [2] : vector<8x8x8xf32> to vector<8x8xf32>
    %44 = vector.shape_cast %43 : vector<8x8xf32> to vector<8x8x1xf32>
    %45 = vector.broadcast %44 : vector<8x8x1xf32> to vector<8x8x8xf32>
    %46 = arith.divf %42, %45 : vector<8x8x8xf32>
    %47 = arith.truncf %46 : vector<8x8x8xf32> to vector<8x8x8xbf16>
    %48 = arith.truncf %21 : vector<8x8x8xf32> to vector<8x8x8xbf16>
    "tpu.trace_start"() <{level = 10 : i32, message = "bqk,bkd->bqd"}> : () -> ()
    %cst_23 = arith.constant dense<0.000000e+00> : vector<8x8x8xf32>
    %49 = tpu.matmul %47, %48, %cst_23 {dimension_numbers = #tpu.dot_dimension_numbers<[2], [1], [1], [2], [0, 0, 0, 1, 1, 2], [0], [0]>} : vector<8x8x8xbf16>, vector<8x8x8xbf16>, vector<8x8x8xf32> -> vector<8x8x8xf32>
    "tpu.trace_stop"() : () -> ()
    %50 = vector.shape_cast %49 : vector<8x8x8xf32> to vector<4x16x8xf32>
    %51 = arith.truncf %50 : vector<4x16x8xf32> to vector<4x16x8xbf16>
    "tpu.trace_start"() <{level = 10 : i32, message = "hmd,hde->hme"}> : () -> ()
    %cst_24 = arith.constant dense<0.000000e+00> : vector<4x16x32xf32>
    %52 = tpu.matmul %51, %4, %cst_24 {dimension_numbers = #tpu.dot_dimension_numbers<[2], [1], [1], [2], [0, 0, 0, 1, 1, 2], [0], [0]>} : vector<4x16x8xbf16>, vector<4x8x32xbf16>, vector<4x16x32xf32> -> vector<4x16x32xf32>
    "tpu.trace_stop"() : () -> ()
    %cst_25 = arith.constant dense<0.000000e+00> : vector<16x32xf32>
    %53 = vector.multi_reduction <add>, %52, %cst_25 [0] : vector<4x16x32xf32> to vector<16x32xf32>
    %54 = vector.broadcast %9 : vector<1x32xf32> to vector<16x32xf32>
    %55 = arith.addf %53, %54 : vector<16x32xf32>
    %c0_26 = arith.constant 0 : index
    %c0_27 = arith.constant 0 : index
    %56 = vector.load %arg1[%c0_26, %c0_27] : memref<16x32xf32, #tpu.memory_space<vmem>>, vector<16x32xf32>
    %57 = arith.addf %55, %56 : vector<16x32xf32>
    %cst_28 = arith.constant dense<0.000000e+00> : vector<16xf32>
    %58 = vector.multi_reduction <add>, %57, %cst_28 [1] : vector<16x32xf32> to vector<16xf32>
    %59 = vector.shape_cast %58 : vector<16xf32> to vector<16x1xf32>
    %cst_29 = arith.constant 3.200000e+01 : f32
    %60 = vector.broadcast %cst_29 : f32 to vector<16x1xf32>
    %61 = arith.divf %59, %60 : vector<16x1xf32>
    %62 = vector.broadcast %61 : vector<16x1xf32> to vector<16x32xf32>
    %63 = arith.subf %57, %62 : vector<16x32xf32>
    %64 = arith.mulf %63, %63 : vector<16x32xf32>
    %cst_30 = arith.constant dense<0.000000e+00> : vector<16xf32>
    %65 = vector.multi_reduction <add>, %64, %cst_30 [1] : vector<16x32xf32> to vector<16xf32>
    %66 = vector.shape_cast %65 : vector<16xf32> to vector<16x1xf32>
    %cst_31 = arith.constant 3.200000e+01 : f32
    %67 = vector.broadcast %cst_31 : f32 to vector<16x1xf32>
    %68 = arith.divf %66, %67 : vector<16x1xf32>
    %69 = vector.broadcast %61 : vector<16x1xf32> to vector<16x32xf32>
    %70 = arith.subf %57, %69 : vector<16x32xf32>
    %cst_32 = arith.constant 9.99999974E-6 : f32
    %71 = vector.broadcast %cst_32 : f32 to vector<16x1xf32>
    %72 = arith.addf %68, %71 : vector<16x1xf32>
    %73 = math.rsqrt %72 : vector<16x1xf32>
    %74 = vector.broadcast %73 : vector<16x1xf32> to vector<16x32xf32>
    %75 = arith.mulf %70, %74 : vector<16x32xf32>
    %76 = vector.broadcast %10 : vector<1x32xf32> to vector<16x32xf32>
    %77 = arith.mulf %75, %76 : vector<16x32xf32>
    %78 = vector.broadcast %11 : vector<1x32xf32> to vector<16x32xf32>
    %79 = arith.addf %77, %78 : vector<16x32xf32>
    %80 = arith.truncf %79 : vector<16x32xf32> to vector<16x32xbf16>
    %cst_33 = arith.constant dense<0.000000e+00> : vector<16x64xf32>
    %81 = tpu.matmul %80, %6, %cst_33 {dimension_numbers = #tpu.dot_dimension_numbers<[1], [0], [0], [1], [0, 0, 1, 1], [], []>} : vector<16x32xbf16>, vector<32x64xbf16>, vector<16x64xf32> -> vector<16x64xf32>
    %82 = vector.broadcast %12 : vector<1x64xf32> to vector<16x64xf32>
    %83 = arith.addf %81, %82 : vector<16x64xf32>
    %cst_34 = arith.constant 0.000000e+00 : f32
    %84 = vector.broadcast %cst_34 : f32 to vector<16x64xf32>
    %85 = arith.maximumf %83, %84 : vector<16x64xf32>
    %86 = arith.truncf %85 : vector<16x64xf32> to vector<16x64xbf16>
    %cst_35 = arith.constant dense<0.000000e+00> : vector<16x32xf32>
    %87 = tpu.matmul %86, %8, %cst_35 {dimension_numbers = #tpu.dot_dimension_numbers<[1], [0], [0], [1], [0, 0, 1, 1], [], []>} : vector<16x64xbf16>, vector<64x32xbf16>, vector<16x32xf32> -> vector<16x32xf32>
    %88 = vector.broadcast %13 : vector<1x32xf32> to vector<16x32xf32>
    %89 = arith.addf %87, %88 : vector<16x32xf32>
    %90 = arith.addf %89, %79 : vector<16x32xf32>
    %cst_36 = arith.constant dense<0.000000e+00> : vector<16xf32>
    %91 = vector.multi_reduction <add>, %90, %cst_36 [1] : vector<16x32xf32> to vector<16xf32>
    %92 = vector.shape_cast %91 : vector<16xf32> to vector<16x1xf32>
    %cst_37 = arith.constant 3.200000e+01 : f32
    %93 = vector.broadcast %cst_37 : f32 to vector<16x1xf32>
    %94 = arith.divf %92, %93 : vector<16x1xf32>
    %95 = vector.broadcast %94 : vector<16x1xf32> to vector<16x32xf32>
    %96 = arith.subf %90, %95 : vector<16x32xf32>
    %97 = arith.mulf %96, %96 : vector<16x32xf32>
    %cst_38 = arith.constant dense<0.000000e+00> : vector<16xf32>
    %98 = vector.multi_reduction <add>, %97, %cst_38 [1] : vector<16x32xf32> to vector<16xf32>
    %99 = vector.shape_cast %98 : vector<16xf32> to vector<16x1xf32>
    %cst_39 = arith.constant 3.200000e+01 : f32
    %100 = vector.broadcast %cst_39 : f32 to vector<16x1xf32>
    %101 = arith.divf %99, %100 : vector<16x1xf32>
    %102 = vector.broadcast %94 : vector<16x1xf32> to vector<16x32xf32>
    %103 = arith.subf %90, %102 : vector<16x32xf32>
    %cst_40 = arith.constant 9.99999974E-6 : f32
    %104 = vector.broadcast %cst_40 : f32 to vector<16x1xf32>
    %105 = arith.addf %101, %104 : vector<16x1xf32>
    %106 = math.rsqrt %105 : vector<16x1xf32>
    %107 = vector.broadcast %106 : vector<16x1xf32> to vector<16x32xf32>
    %108 = arith.mulf %103, %107 : vector<16x32xf32>
    %109 = vector.broadcast %14 : vector<1x32xf32> to vector<16x32xf32>
    %110 = arith.mulf %108, %109 : vector<16x32xf32>
    %111 = vector.broadcast %15 : vector<1x32xf32> to vector<16x32xf32>
    %112 = arith.addf %110, %111 : vector<16x32xf32>
    %c0_41 = arith.constant 0 : index
    %c0_42 = arith.constant 0 : index
    %113 = vector.load %arg4[%c0_41, %c0_42] : memref<16x32xf32, #tpu.memory_space<vmem>>, vector<16x32xf32>
    tpu.vector_store %arg4[%c0_41, %c0_42], %112 {strides = array<i32>} : memref<16x32xf32, #tpu.memory_space<vmem>>, vector<16x32xf32>,
    return
  }
}

</mosaic_0001>

<llo_original>
// kernel: transformer_block.1
$region0: #{transformer_block.1}
  #allocation0 [shape = 'u32[]', space=smem, size = 0x4, offset = 0x4, fixed_abs, tag = 'smem constant byte address 0x4 - core index']
  #allocation1 [shape = 'u32[144,128]{1,0:T(1,128)}', space=vmem, size = 0x12000, scoped, tag = 'internal scratch']
  %s0 = inlined_call_operand.vmem [shape: f32[8,8,24], index: 0, kind: input, shape index: {}]
  %s1 = inlined_call_operand.vmem [shape: f32[16,32], index: 1, kind: input, shape index: {}]
  %s2 = inlined_call_operand.vmem [shape: f32[2,8,8], index: 2, kind: input, shape index: {}]
  %s3 = inlined_call_operand.vmem [shape: f32[160,128], index: 3, kind: input, shape index: {}]
  %s4 = inlined_call_operand.hbm [shape: f32[16,32], index: 4, kind: output, shape index: {}]
  %s5 = sld [smem:[#allocation0]]
  $region26: #{transformer_block.1} parent=0
    _
  %s7 = ssub.s32 1, %s5
  %s8 = scalar_select 0, %s7, %s5
  $region1: #{transformer_block.1} parent=0
    #allocation2 [shape = 'u8[8192]{0}', space=vmem, size = 0x2000, scoped, tag = 'output window, operand 0, single buffered']
    #allocation3 [shape = 's32[1]{0}', space=sflag, size = 0x4, scoped, tag = 'scoped memory for transformer_block.1']
    %9 = vsyncpa [#allocation3], 0
    // Predicated region
    $region2: #{transformer_block.1} parent=1 // pred_check
      _
    $region3: #{transformer_block.1} parent=1 // pred_check_branch
      %11 = sbr.rel (0) target = $region5
    $region4: #{transformer_block.1} parent=1 // pred_region
      _
    $region5: #{transformer_block.1} parent=1 // pred_fallthru
      _
    // Predicated region
    $region6: #{transformer_block.1} parent=1 // pred_check
      _
    $region7: #{transformer_block.1} parent=1 // pred_check_branch
      %13 = sbr.rel (0) target = $region9
    $region8: #{transformer_block.1} parent=1 // pred_region
      _
    $region9: #{transformer_block.1} parent=1 // pred_fallthru
      _
    // Predicated region
    $region10: #{transformer_block.1} parent=1 // pred_check
      _
    $region11: #{transformer_block.1} parent=1 // pred_check_branch
      %15 = sbr.rel (0) target = $region13
    $region12: #{transformer_block.1} parent=1 // pred_region
      _
    $region13: #{transformer_block.1} parent=1 // pred_fallthru
      _
    // Predicated region
    $region14: #{transformer_block.1} parent=1 // pred_check
      _
    $region15: #{transformer_block.1} parent=1 // pred_check_branch
      %17 = sbr.rel (0) target = $region17
    $region16: #{transformer_block.1} parent=1 // pred_region
      _
    $region17: #{transformer_block.1} parent=1 // pred_fallthru
      _
    %v19 = vld [vmem:[%s3] sm:$0xff]
    %v20 = vld [vmem:[%s3 + $0x8] sm:$0xff]
    %v21 = vld [vmem:[%s3 + $0x10] sm:$0xff]
    %v22 = vpack.c.bf16 %v20, %v19
    %v23 = vpack.c.bf16 %v21, %v21
    %v24 = vld [vmem:[%s3 + $0x18] sm:$0xff]
    %v25 = vld [vmem:[%s3 + $0x20] sm:$0xff]
    %v26 = vld [vmem:[%s3 + $0x28] sm:$0xff]
    %v27 = vld [vmem:[%s3 + $0x30] sm:$0xff]
    %v28 = vpack.c.bf16 %v24, %v24
    %v29 = vpack.c.bf16 %v25, %v25
    %v30 = vpack.c.bf16 %v26, %v26
    %v31 = vpack.c.bf16 %v27, %v27
    %v32 = vld [vmem:[%s3 + $0x38] sm:$0xff]
    %v33 = vld [vmem:[%s3 + $0x40] sm:$0xff]
    %v34 = vld [vmem:[%s3 + $0x48] sm:$0xff]
    %v35 = vld [vmem:[%s3 + $0x50] sm:$0xff]
    %v36 = vpack.c.bf16 %v33, %v32
    %v37 = vpack.c.bf16 %v35, %v34
    %v38 = vld [vmem:[%s3 + $0x58] sm:$0xff]
    %v39 = vld [vmem:[%s3 + $0x60] sm:$0xff]
    %v40 = vld [vmem:[%s3 + $0x68] sm:$0xff]
    %v41 = vld [vmem:[%s3 + $0x70] sm:$0xff]
    %v42 = vld [vmem:[%s3 + $0x78] sm:$0xff]
    %v43 = vld [vmem:[%s3 + $0x80] sm:$0xff]
    %v44 = vld [vmem:[%s3 + $0x88] sm:$0xff]
    %v45 = vld [vmem:[%s3 + $0x90] sm:$0xff]
    %v46 = vpack.c.bf16 %v39, %v38
    %v47 = vpack.c.bf16 %v41, %v40
    %v48 = vpack.c.bf16 %v43, %v42
    %v49 = vpack.c.bf16 %v45, %v44
    %v50 = vld [vmem:[%s3 + $0x98] sm:$0x1]
    %v51 = vld [vmem:[%s3 + $0x99] sm:$0x1]
    %v52 = vld [vmem:[%s3 + $0x9a] sm:$0x1]
    %v53 = vld [vmem:[%s3 + $0x9b] sm:$0x1]
    %v54 = vld [vmem:[%s3 + $0x9c] sm:$0x1]
    %v55 = vld [vmem:[%s3 + $0x9d] sm:$0x1]
    %v56 = vld [vmem:[%s3 + $0x9e] sm:$0x1]
    %v57 = vld [vmem:[%s0] sm:$0xff]
    %v58 = vld [vmem:[%s0 + $0x8] sm:$0xff]
    %v59 = vld [vmem:[%s0 + $0x10] sm:$0xff]
    %v60 = vld [vmem:[%s0 + $0x18] sm:$0xff]
    %v61 = vld [vmem:[%s0 + $0x20] sm:$0xff]
    %v62 = vld [vmem:[%s0 + $0x28] sm:$0xff]
    %v63 = vld [vmem:[%s0 + $0x30] sm:$0xff]
    %v64 = vld [vmem:[%s0 + $0x38] sm:$0xff]
    %v65 = vpack.c.bf16 %v58, %v57
    %v66 = vpack.c.bf16 %v60, %v59
    %v67 = vpack.c.bf16 %v62, %v61
    %v68 = vpack.c.bf16 %v64, %v63
    %vm69 = vcmask 195584
    %v71 = vsel %vm69, %v65, 0
    %v74 = vsel %vm69, %v66, 0
    %v77 = vsel %vm69, %v67, 0
    %v80 = vsel %vm69, %v68, 0
    %vm82 = vcmask 1043456
    %v84 = vsel %vm82, %v23, 0
    %86 = vmatprep.subr.bf16.mxu0 0
    %87 = vmatpush1.bf16.msra.mxu0 %v22
    %88 = vmatprep.subr.bf16.mxu0 0
    %89 = vmatpush1.bf16.msra.mxu0 %v84
    %90 = vmatprep.subr.bf16.mxu0 0
    %91 = vmatpush1.bf16.msra.mxu0 0
    %92 = vmatprep.subr.bf16.mxu0 0
    %93 = vmatpush1.bf16.msra.mxu0 0
    %94 = vmatprep.subr.bf16.mxu0 0
    %95 = vmatpush1.bf16.msra.mxu0 0
    %96 = vmatprep.subr.bf16.mxu0 0
    %97 = vmatpush1.bf16.msra.mxu0 0
    %98 = vmatprep.subr.bf16.mxu0 0
    %99 = vmatpush1.bf16.msra.mxu0 0
    %100 = vmatprep.subr.bf16.mxu0 0
    %101 = vmatpush1.bf16.msra.mxu0 0
    %102 = vmatprep.subr.bf16.mxu0 0
    %103 = vmatpush1.bf16.msra.mxu0 0
    %104 = vmatprep.subr.bf16.mxu0 0
    %105 = vmatpush1.bf16.msra.mxu0 0
    %106 = vmatprep.subr.bf16.mxu0 0
    %107 = vmatpush1.bf16.msra.mxu0 0
    %108 = vmatprep.subr.bf16.mxu0 0
    %109 = vmatpush1.bf16.msra.mxu0 0
    %110 = vmatprep.subr.bf16.mxu0 0
    %111 = vmatpush1.bf16.msra.mxu0 0
    %112 = vmatprep.subr.bf16.mxu0 0
    %113 = vmatpush1.bf16.msra.mxu0 0
    %114 = vmatprep.subr.bf16.mxu0 0
    %115 = vmatpush1.bf16.msra.mxu0 0
    %116 = vmatprep.subr.bf16.mxu0 0
    %117 = vmatpush1.bf16.msra.mxu0 0
    %118 = vmatprep.mubr.bf16.mxu0 0
    %119 = vmatmul.mubr.bf16.gmra.mrb[0].mxu0 %v71
    %v120 = vpop.f32.mrb[0].mxu0
    %v121 = vadd.f32 0.0, %v120
    %v122 = vpop.f32.mrb[0].mxu0
    %v123 = vpop.f32.mrb[0].mxu0
    %v124 = vadd.f32 0.0, %v123
    %v125 = vpop.f32.mrb[0].mxu0
    %126 = vmatprep.mubr.bf16.mxu0 0
    %127 = vmatmul.mubr.bf16.gmra.mrb[0].mxu0 %v74
    %v128 = vpop.f32.mrb[0].mxu0
    %v129 = vadd.f32 0.0, %v128
    %v130 = vpop.f32.mrb[0].mxu0
    %v131 = vpop.f32.mrb[0].mxu0
    %v132 = vadd.f32 0.0, %v131
    %v133 = vpop.f32.mrb[0].mxu0
    %134 = vmatprep.mubr.bf16.mxu0 0
    %135 = vmatmul.mubr.bf16.gmra.mrb[0].mxu0 %v77
    %v136 = vpop.f32.mrb[0].mxu0
    %v137 = vadd.f32 0.0, %v136
    %v138 = vpop.f32.mrb[0].mxu0
    %v139 = vpop.f32.mrb[0].mxu0
    %v140 = vadd.f32 0.0, %v139
    %v141 = vpop.f32.mrb[0].mxu0
    %142 = vmatprep.mubr.bf16.mxu0 0
    %143 = vmatmul.mubr.bf16.gmra.mrb[0].mxu0 %v80
    %v144 = vpop.f32.mrb[0].mxu0
    %v145 = vadd.f32 0.0, %v144
    %v146 = vpop.f32.mrb[0].mxu0
    %v147 = vpop.f32.mrb[0].mxu0
    %v148 = vadd.f32 0.0, %v147
    %v149 = vpop.f32.mrb[0].mxu0
    %150 = vdwg.mxu0
    %v151 = vpack.c.bf16 %v121, %v121
    %v152 = vpack.c.bf16 %v124, %v124
    %v153 = vpack.c.bf16 %v129, %v129
    %v154 = vpack.c.bf16 %v132, %v132
    %v155 = vpack.c.bf16 %v137, %v137
    %v156 = vpack.c.bf16 %v140, %v140
    %v157 = vpack.c.bf16 %v145, %v145
    %v158 = vpack.c.bf16 %v148, %v148
    %160 = vrot.lane.b32.xlu0 %v151, 112
    %v161 = vpop.permute.xlu0 %160
    %162 = vrot.lane.b32.xlu0 %v151, 120
    %v163 = vpop.permute.xlu0 %162
    %vm164 = vcmask 64512
    %v166 = vsel %vm164, %v161, 0
    %v169 = vsel %vm164, %v163, 0
    %171 = vmatprep.subr.bf16.mxu0 0
    %172 = vmatpush1.bf16.xpose.msra.mxu0 %v169
    %173 = vmatprep.subr.bf16.mxu0 0
    %174 = vmatpush1.bf16.xpose.msra.mxu0 0
    %175 = vmatprep.subr.bf16.mxu0 0
    %176 = vmatpush1.bf16.xpose.msra.mxu0 0
    %177 = vmatprep.subr.bf16.mxu0 0
    %178 = vmatpush1.bf16.xpose.msra.mxu0 0
    %179 = vmatprep.subr.bf16.mxu0 0
    %180 = vmatpush1.bf16.xpose.msra.mxu0 0
    %181 = vmatprep.subr.bf16.mxu0 0
    %182 = vmatpush1.bf16.xpose.msra.mxu0 0
    %183 = vmatprep.subr.bf16.mxu0 0
    %184 = vmatpush1.bf16.xpose.msra.mxu0 0
    %185 = vmatprep.subr.bf16.mxu0 0
    %186 = vmatpush1.bf16.xpose.msra.mxu0 0
    %187 = vmatprep.subr.bf16.mxu0 0
    %188 = vmatpush1.bf16.xpose.msra.mxu0 0
    %189 = vmatprep.subr.bf16.mxu0 0
    %190 = vmatpush1.bf16.xpose.msra.mxu0 0
    %191 = vmatprep.subr.bf16.mxu0 0
    %192 = vmatpush1.bf16.xpose.msra.mxu0 0
    %193 = vmatprep.subr.bf16.mxu0 0
    %194 = vmatpush1.bf16.xpose.msra.mxu0 0
    %195 = vmatprep.subr.bf16.mxu0 0
    %196 = vmatpush1.bf16.xpose.msra.mxu0 0
    %197 = vmatprep.subr.bf16.mxu0 0
    %198 = vmatpush1.bf16.xpose.msra.mxu0 0
    %199 = vmatprep.subr.bf16.mxu0 0
    %200 = vmatpush1.bf16.xpose.msra.mxu0 0
    %201 = vmatprep.subr.bf16.mxu0 0
    %202 = vmatpush1.bf16.xpose.msra.mxu0 0
    %203 = vmatprep.mubr.bf16.mxu0 0
    %204 = vmatmul.mubr.bf16.gmra.mrb[0].mxu0 %v166
    %v205 = vpop.f32.mrb[0].mxu0
    %v206 = vadd.f32 0.0, %v205
    %v207 = vpop.f32.mrb[0].mxu0
    %v208 = vpop.f32.mrb[0].mxu0
    %v209 = vpop.f32.mrb[0].mxu0
    %210 = vdwg.mxu0
    %212 = vrot.lane.b32.xlu0 %v152, 112
    %v213 = vpop.permute.xlu0 %212
    %214 = vrot.lane.b32.xlu0 %v152, 120
    %v215 = vpop.permute.xlu0 %214
    %v217 = vsel %vm164, %v213, 0
    %v220 = vsel %vm164, %v215, 0
    %222 = vmatprep.subr.bf16.mxu0 0
    %223 = vmatpush1.bf16.xpose.msra.mxu0 %v220
    %224 = vmatprep.subr.bf16.mxu0 0
    %225 = vmatpush1.bf16.xpose.msra.mxu0 0
    %226 = vmatprep.subr.bf16.mxu0 0
    %227 = vmatpush1.bf16.xpose.msra.mxu0 0
    %228 = vmatprep.subr.bf16.mxu0 0
    %229 = vmatpush1.bf16.xpose.msra.mxu0 0
    %230 = vmatprep.subr.bf16.mxu0 0
    %231 = vmatpush1.bf16.xpose.msra.mxu0 0
    %232 = vmatprep.subr.bf16.mxu0 0
    %233 = vmatpush1.bf16.xpose.msra.mxu0 0
    %234 = vmatprep.subr.bf16.mxu0 0
    %235 = vmatpush1.bf16.xpose.msra.mxu0 0
    %236 = vmatprep.subr.bf16.mxu0 0
    %237 = vmatpush1.bf16.xpose.msra.mxu0 0
    %238 = vmatprep.subr.bf16.mxu0 0
    %239 = vmatpush1.bf16.xpose.msra.mxu0 0
    %240 = vmatprep.subr.bf16.mxu0 0
    %241 = vmatpush1.bf16.xpose.msra.mxu0 0
    %242 = vmatprep.subr.bf16.mxu0 0
    %243 = vmatpush1.bf16.xpose.msra.mxu0 0
    %244 = vmatprep.subr.bf16.mxu0 0
    %245 = vmatpush1.bf16.xpose.msra.mxu0 0
    %246 = vmatprep.subr.bf16.mxu0 0
    %247 = vmatpush1.bf16.xpose.msra.mxu0 0
    %248 = vmatprep.subr.bf16.mxu0 0
    %249 = vmatpush1.bf16.xpose.msra.mxu0 0
    %250 = vmatprep.subr.bf16.mxu0 0
    %251 = vmatpush1.bf16.xpose.msra.mxu0 0
    %252 = vmatprep.subr.bf16.mxu0 0
    %253 = vmatpush1.bf16.xpose.msra.mxu0 0
    %254 = vmatprep.mubr.bf16.mxu0 0
    %255 = vmatmul.mubr.bf16.gmra.mrb[0].mxu0 %v217
    %v256 = vpop.f32.mrb[0].mxu0
    %v257 = vadd.f32 0.0, %v256
    %v258 = vpop.f32.mrb[0].mxu0
    %v259 = vpop.f32.mrb[0].mxu0
    %v260 = vpop.f32.mrb[0].mxu0
    %261 = vdwg.mxu0
    %263 = vrot.lane.b32.xlu0 %v153, 112
    %v264 = vpop.permute.xlu0 %263
    %265 = vrot.lane.b32.xlu0 %v153, 120
    %v266 = vpop.permute.xlu0 %265
    %v268 = vsel %vm164, %v264, 0
    %v271 = vsel %vm164, %v266, 0
    %273 = vmatprep.subr.bf16.mxu0 0
    %274 = vmatpush1.bf16.xpose.msra.mxu0 %v271
    %275 = vmatprep.subr.bf16.mxu0 0
    %276 = vmatpush1.bf16.xpose.msra.mxu0 0
    %277 = vmatprep.subr.bf16.mxu0 0
    %278 = vmatpush1.bf16.xpose.msra.mxu0 0
    %279 = vmatprep.subr.bf16.mxu0 0
    %280 = vmatpush1.bf16.xpose.msra.mxu0 0
    %281 = vmatprep.subr.bf16.mxu0 0
    %282 = vmatpush1.bf16.xpose.msra.mxu0 0
    %283 = vmatprep.subr.bf16.mxu0 0
    %284 = vmatpush1.bf16.xpose.msra.mxu0 0
    %285 = vmatprep.subr.bf16.mxu0 0
    %286 = vmatpush1.bf16.xpose.msra.mxu0 0
    %287 = vmatprep.subr.bf16.mxu0 0
    %288 = vmatpush1.bf16.xpose.msra.mxu0 0
    %289 = vmatprep.subr.bf16.mxu0 0
    %290 = vmatpush1.bf16.xpose.msra.mxu0 0
    %291 = vmatprep.subr.bf16.mxu0 0
    %292 = vmatpush1.bf16.xpose.msra.mxu0 0
    %293 = vmatprep.subr.bf16.mxu0 0
    %294 = vmatpush1.bf16.xpose.msra.mxu0 0
    %295 = vmatprep.subr.bf16.mxu0 0
    %296 = vmatpush1.bf16.xpose.msra.mxu0 0
    %297 = vmatprep.subr.bf16.mxu0 0
    %298 = vmatpush1.bf16.xpose.msra.mxu0 0
    %299 = vmatprep.subr.bf16.mxu0 0
    %300 = vmatpush1.bf16.xpose.msra.mxu0 0
    %301 = vmatprep.subr.bf16.mxu0 0
    %302 = vmatpush1.bf16.xpose.msra.mxu0 0
    %303 = vmatprep.subr.bf16.mxu0 0
    %304 = vmatpush1.bf16.xpose.msra.mxu0 0
    %305 = vmatprep.mubr.bf16.mxu0 0
    %306 = vmatmul.mubr.bf16.gmra.mrb[0].mxu0 %v268
    %v307 = vpop.f32.mrb[0].mxu0
    %v308 = vadd.f32 0.0, %v307
    %v309 = vpop.f32.mrb[0].mxu0
    %v310 = vpop.f32.mrb[0].mxu0
    %v311 = vpop.f32.mrb[0].mxu0
    %312 = vdwg.mxu0
    %314 = vrot.lane.b32.xlu0 %v154, 112
    %v315 = vpop.permute.xlu0 %314
    %316 = vrot.lane.b32.xlu0 %v154, 120
    %v317 = vpop.permute.xlu0 %316
    %v319 = vsel %vm164, %v315, 0
    %v322 = vsel %vm164, %v317, 0
    %324 = vmatprep.subr.bf16.mxu0 0
    %325 = vmatpush1.bf16.xpose.msra.mxu0 %v322
    %326 = vmatprep.subr.bf16.mxu0 0
    %327 = vmatpush1.bf16.xpose.msra.mxu0 0
    %328 = vmatprep.subr.bf16.mxu0 0
    %329 = vmatpush1.bf16.xpose.msra.mxu0 0
    %330 = vmatprep.subr.bf16.mxu0 0
    %331 = vmatpush1.bf16.xpose.msra.mxu0 0
    %332 = vmatprep.subr.bf16.mxu0 0
    %333 = vmatpush1.bf16.xpose.msra.mxu0 0
    %334 = vmatprep.subr.bf16.mxu0 0
    %335 = vmatpush1.bf16.xpose.msra.mxu0 0
    %336 = vmatprep.subr.bf16.mxu0 0
    %337 = vmatpush1.bf16.xpose.msra.mxu0 0
    %338 = vmatprep.subr.bf16.mxu0 0
    %339 = vmatpush1.bf16.xpose.msra.mxu0 0
    %340 = vmatprep.subr.bf16.mxu0 0
    %341 = vmatpush1.bf16.xpose.msra.mxu0 0
    %342 = vmatprep.subr.bf16.mxu0 0
    %343 = vmatpush1.bf16.xpose.msra.mxu0 0
    %344 = vmatprep.subr.bf16.mxu0 0
    %345 = vmatpush1.bf16.xpose.msra.mxu0 0
    %346 = vmatprep.subr.bf16.mxu0 0
    %347 = vmatpush1.bf16.xpose.msra.mxu0 0
    %348 = vmatprep.subr.bf16.mxu0 0
    %349 = vmatpush1.bf16.xpose.msra.mxu0 0
    %350 = vmatprep.subr.bf16.mxu0 0
    %351 = vmatpush1.bf16.xpose.msra.mxu0 0
    %352 = vmatprep.subr.bf16.mxu0 0
    %353 = vmatpush1.bf16.xpose.msra.mxu0 0
    %354 = vmatprep.subr.bf16.mxu0 0
    %355 = vmatpush1.bf16.xpose.msra.mxu0 0
    %356 = vmatprep.mubr.bf16.mxu0 0
    %357 = vmatmul.mubr.bf16.gmra.mrb[0].mxu0 %v319
    %v358 = vpop.f32.mrb[0].mxu0
    %v359 = vadd.f32 0.0, %v358
    %v360 = vpop.f32.mrb[0].mxu0
    %v361 = vpop.f32.mrb[0].mxu0
    %v362 = vpop.f32.mrb[0].mxu0
    %363 = vdwg.mxu0
    %365 = vrot.lane.b32.xlu0 %v155, 112
    %v366 = vpop.permute.xlu0 %365
    %367 = vrot.lane.b32.xlu0 %v155, 120
    %v368 = vpop.permute.xlu0 %367
    %v370 = vsel %vm164, %v366, 0
    %v373 = vsel %vm164, %v368, 0
    %375 = vmatprep.subr.bf16.mxu0 0
    %376 = vmatpush1.bf16.xpose.msra.mxu0 %v373
    %377 = vmatprep.subr.bf16.mxu0 0
    %378 = vmatpush1.bf16.xpose.msra.mxu0 0
    %379 = vmatprep.subr.bf16.mxu0 0
    %380 = vmatpush1.bf16.xpose.msra.mxu0 0
    %381 = vmatprep.subr.bf16.mxu0 0
    %382 = vmatpush1.bf16.xpose.msra.mxu0 0
    %383 = vmatprep.subr.bf16.mxu0 0
    %384 = vmatpush1.bf16.xpose.msra.mxu0 0
    %385 = vmatprep.subr.bf16.mxu0 0
    %386 = vmatpush1.bf16.xpose.msra.mxu0 0
    %387 = vmatprep.subr.bf16.mxu0 0
    %388 = vmatpush1.bf16.xpose.msra.mxu0 0
    %389 = vmatprep.subr.bf16.mxu0 0
    %390 = vmatpush1.bf16.xpose.msra.mxu0 0
    %391 = vmatprep.subr.bf16.mxu0 0
    %392 = vmatpush1.bf16.xpose.msra.mxu0 0
    %393 = vmatprep.subr.bf16.mxu0 0
    %394 = vmatpush1.bf16.xpose.msra.mxu0 0
    %395 = vmatprep.subr.bf16.mxu0 0
    %396 = vmatpush1.bf16.xpose.msra.mxu0 0
    %397 = vmatprep.subr.bf16.mxu0 0
    %398 = vmatpush1.bf16.xpose.msra.mxu0 0
    %399 = vmatprep.subr.bf16.mxu0 0
    %400 = vmatpush1.bf16.xpose.msra.mxu0 0
    %401 = vmatprep.subr.bf16.mxu0 0
    %402 = vmatpush1.bf16.xpose.msra.mxu0 0
    %403 = vmatprep.subr.bf16.mxu0 0
    %404 = vmatpush1.bf16.xpose.msra.mxu0 0
    %405 = vmatprep.subr.bf16.mxu0 0
    %406 = vmatpush1.bf16.xpose.msra.mxu0 0
    %407 = vmatprep.mubr.bf16.mxu0 0
    %408 = vmatmul.mubr.bf16.gmra.mrb[0].mxu0 %v370
    %v409 = vpop.f32.mrb[0].mxu0
    %v410 = vadd.f32 0.0, %v409
    %v411 = vpop.f32.mrb[0].mxu0
    %v412 = vpop.f32.mrb[0].mxu0
    %v413 = vpop.f32.mrb[0].mxu0
    %414 = vdwg.mxu0
    %416 = vrot.lane.b32.xlu0 %v156, 112
    %v417 = vpop.permute.xlu0 %416
    %418 = vrot.lane.b32.xlu0 %v156, 120
    %v419 = vpop.permute.xlu0 %418
    %v421 = vsel %vm164, %v417, 0
    %v424 = vsel %vm164, %v419, 0
    %426 = vmatprep.subr.bf16.mxu0 0
    %427 = vmatpush1.bf16.xpose.msra.mxu0 %v424
    %428 = vmatprep.subr.bf16.mxu0 0
    %429 = vmatpush1.bf16.xpose.msra.mxu0 0
    %430 = vmatprep.subr.bf16.mxu0 0
    %431 = vmatpush1.bf16.xpose.msra.mxu0 0
    %432 = vmatprep.subr.bf16.mxu0 0
    %433 = vmatpush1.bf16.xpose.msra.mxu0 0
    %434 = vmatprep.subr.bf16.mxu0 0
    %435 = vmatpush1.bf16.xpose.msra.mxu0 0
    %436 = vmatprep.subr.bf16.mxu0 0
    %437 = vmatpush1.bf16.xpose.msra.mxu0 0
    %438 = vmatprep.subr.bf16.mxu0 0
    %439 = vmatpush1.bf16.xpose.msra.mxu0 0
    %440 = vmatprep.subr.bf16.mxu0 0
    %441 = vmatpush1.bf16.xpose.msra.mxu0 0
    %442 = vmatprep.subr.bf16.mxu0 0
    %443 = vmatpush1.bf16.xpose.msra.mxu0 0
    %444 = vmatprep.subr.bf16.mxu0 0
    %445 = vmatpush1.bf16.xpose.msra.mxu0 0
    %446 = vmatprep.subr.bf16.mxu0 0
    %447 = vmatpush1.bf16.xpose.msra.mxu0 0
    %448 = vmatprep.subr.bf16.mxu0 0
    %449 = vmatpush1.bf16.xpose.msra.mxu0 0
    %450 = vmatprep.subr.bf16.mxu0 0
    %451 = vmatpush1.bf16.xpose.msra.mxu0 0
    %452 = vmatprep.subr.bf16.mxu0 0
    %453 = vmatpush1.bf16.xpose.msra.mxu0 0
    %454 = vmatprep.subr.bf16.mxu0 0
    %455 = vmatpush1.bf16.xpose.msra.mxu0 0
    %456 = vmatprep.subr.bf16.mxu0 0
    %457 = vmatpush1.bf16.xpose.msra.mxu0 0
    %458 = vmatprep.mubr.bf16.mxu0 0
    %459 = vmatmul.mubr.bf16.gmra.mrb[0].mxu0 %v421
    %v460 = vpop.f32.mrb[0].mxu0
    %v461 = vadd.f32 0.0, %v460
    %v462 = vpop.f32.mrb[0].mxu0
    %v463 = vpop.f32.mrb[0].mxu0
    %v464 = vpop.f32.mrb[0].mxu0
    %465 = vdwg.mxu0
    %467 = vrot.lane.b32.xlu0 %v157, 112
    %v468 = vpop.permute.xlu0 %467
    %469 = vrot.lane.b32.xlu0 %v157, 120
    %v470 = vpop.permute.xlu0 %469
    %v472 = vsel %vm164, %v468, 0
    %v475 = vsel %vm164, %v470, 0
    %477 = vmatprep.subr.bf16.mxu0 0
    %478 = vmatpush1.bf16.xpose.msra.mxu0 %v475
    %479 = vmatprep.subr.bf16.mxu0 0
    %480 = vmatpush1.bf16.xpose.msra.mxu0 0
    %481 = vmatprep.subr.bf16.mxu0 0
    %482 = vmatpush1.bf16.xpose.msra.mxu0 0
    %483 = vmatprep.subr.bf16.mxu0 0
    %484 = vmatpush1.bf16.xpose.msra.mxu0 0
    %485 = vmatprep.subr.bf16.mxu0 0
    %486 = vmatpush1.bf16.xpose.msra.mxu0 0
    %487 = vmatprep.subr.bf16.mxu0 0
    %488 = vmatpush1.bf16.xpose.msra.mxu0 0
    %489 = vmatprep.subr.bf16.mxu0 0
    %490 = vmatpush1.bf16.xpose.msra.mxu0 0
    %491 = vmatprep.subr.bf16.mxu0 0
    %492 = vmatpush1.bf16.xpose.msra.mxu0 0
    %493 = vmatprep.subr.bf16.mxu0 0
    %494 = vmatpush1.bf16.xpose.msra.mxu0 0
    %495 = vmatprep.subr.bf16.mxu0 0
    %496 = vmatpush1.bf16.xpose.msra.mxu0 0
    %497 = vmatprep.subr.bf16.mxu0 0
    %498 = vmatpush1.bf16.xpose.msra.mxu0 0
    %499 = vmatprep.subr.bf16.mxu0 0
    %500 = vmatpush1.bf16.xpose.msra.mxu0 0
    %501 = vmatprep.subr.bf16.mxu0 0
    %502 = vmatpush1.bf16.xpose.msra.mxu0 0
    %503 = vmatprep.subr.bf16.mxu0 0
    %504 = vmatpush1.bf16.xpose.msra.mxu0 0
    %505 = vmatprep.subr.bf16.mxu0 0
    %506 = vmatpush1.bf16.xpose.msra.mxu0 0
    %507 = vmatprep.subr.bf16.mxu0 0
    %508 = vmatpush1.bf16.xpose.msra.mxu0 0
    %509 = vmatprep.mubr.bf16.mxu0 0
    %510 = vmatmul.mubr.bf16.gmra.mrb[0].mxu0 %v472
    %v511 = vpop.f32.mrb[0].mxu0
    %v512 = vadd.f32 0.0, %v511
    %v513 = vpop.f32.mrb[0].mxu0
    %v514 = vpop.f32.mrb[0].mxu0
    %v515 = vpop.f32.mrb[0].mxu0
    %516 = vdwg.mxu0
    %518 = vrot.lane.b32.xlu0 %v158, 112
    %v519 = vpop.permute.xlu0 %518
    %520 = vrot.lane.b32.xlu0 %v158, 120
    %v521 = vpop.permute.xlu0 %520
    %v523 = vsel %vm164, %v519, 0
    %v526 = vsel %vm164, %v521, 0
    %528 = vmatprep.subr.bf16.mxu0 0
    %529 = vmatpush1.bf16.xpose.msra.mxu0 %v526
    %530 = vmatprep.subr.bf16.mxu0 0
    %531 = vmatpush1.bf16.xpose.msra.mxu0 0
    %532 = vmatprep.subr.bf16.mxu0 0
    %533 = vmatpush1.bf16.xpose.msra.mxu0 0
    %534 = vmatprep.subr.bf16.mxu0 0
    %535 = vmatpush1.bf16.xpose.msra.mxu0 0
    %536 = vmatprep.subr.bf16.mxu0 0
    %537 = vmatpush1.bf16.xpose.msra.mxu0 0
    %538 = vmatprep.subr.bf16.mxu0 0
    %539 = vmatpush1.bf16.xpose.msra.mxu0 0
    %540 = vmatprep.subr.bf16.mxu0 0
    %541 = vmatpush1.bf16.xpose.msra.mxu0 0
    %542 = vmatprep.subr.bf16.mxu0 0
    %543 = vmatpush1.bf16.xpose.msra.mxu0 0
    %544 = vmatprep.subr.bf16.mxu0 0
    %545 = vmatpush1.bf16.xpose.msra.mxu0 0
    %546 = vmatprep.subr.bf16.mxu0 0
    %547 = vmatpush1.bf16.xpose.msra.mxu0 0
    %548 = vmatprep.subr.bf16.mxu0 0
    %549 = vmatpush1.bf16.xpose.msra.mxu0 0
    %550 = vmatprep.subr.bf16.mxu0 0
    %551 = vmatpush1.bf16.xpose.msra.mxu0 0
    %552 = vmatprep.subr.bf16.mxu0 0
    %553 = vmatpush1.bf16.xpose.msra.mxu0 0
    %554 = vmatprep.subr.bf16.mxu0 0
    %555 = vmatpush1.bf16.xpose.msra.mxu0 0
    %556 = vmatprep.subr.bf16.mxu0 0
    %557 = vmatpush1.bf16.xpose.msra.mxu0 0
    %558 = vmatprep.subr.bf16.mxu0 0
    %559 = vmatpush1.bf16.xpose.msra.mxu0 0
    %560 = vmatprep.mubr.bf16.mxu0 0
    %561 = vmatmul.mubr.bf16.gmra.mrb[0].mxu0 %v523
    %v562 = vpop.f32.mrb[0].mxu0
    %v563 = vadd.f32 0.0, %v562
    %v564 = vpop.f32.mrb[0].mxu0
    %v565 = vpop.f32.mrb[0].mxu0
    %v566 = vpop.f32.mrb[0].mxu0
    %567 = vdwg.mxu0
    %v568 = vld [vmem:[%s2] sm:$0xff]
    %v569 = vld [vmem:[%s2 + $0x8] sm:$0xff]
    %vm570 = vcmp.eq.f32.partialorder %v568, 0.0
    %vm571 = vcmp.eq.f32.partialorder %v569, 0.0
    %v572 = vsel %vm570, -1.767767e+19, 0.0
    %v573 = vsel %vm571, -1.767767e+19, 0.0
    %v574 = vadd.f32 %v206, %v572
    %v575 = vadd.f32 %v257, %v573
    %v576 = vadd.f32 %v308, %v572
    %v577 = vadd.f32 %v359, %v573
    %v578 = vadd.f32 %v410, %v572
    %v579 = vadd.f32 %v461, %v573
    %v580 = vadd.f32 %v512, %v572
    %v581 = vadd.f32 %v563, %v573
    %v582 = vsel %vm164, %v574, -inf
    %583 = vmax.xlane.f32.xlu0 %v582
    %v584 = vpop.xlane.xlu0 %583
    %v585 = vsel %vm164, %v575, -inf
    %586 = vmax.xlane.f32.xlu0 %v585
    %v587 = vpop.xlane.xlu0 %586
    %v588 = vsel %vm164, %v576, -inf
    %589 = vmax.xlane.f32.xlu0 %v588
    %v590 = vpop.xlane.xlu0 %589
    %v591 = vsel %vm164, %v577, -inf
    %592 = vmax.xlane.f32.xlu0 %v591
    %v593 = vpop.xlane.xlu0 %592
    %v594 = vsel %vm164, %v578, -inf
    %595 = vmax.xlane.f32.xlu0 %v594
    %v596 = vpop.xlane.xlu0 %595
    %v597 = vsel %vm164, %v579, -inf
    %598 = vmax.xlane.f32.xlu0 %v597
    %v599 = vpop.xlane.xlu0 %598
    %v600 = vsel %vm164, %v580, -inf
    %601 = vmax.xlane.f32.xlu0 %v600
    %v602 = vpop.xlane.xlu0 %601
    %v603 = vsel %vm164, %v581, -inf
    %604 = vmax.xlane.f32.xlu0 %v603
    %v605 = vpop.xlane.xlu0 %604
    %v606 = vsub.f32 %v574, %v584
    %v607 = vsub.f32 %v575, %v587
    %v608 = vsub.f32 %v576, %v590
    %v609 = vsub.f32 %v577, %v593
    %v610 = vsub.f32 %v578, %v596
    %v611 = vsub.f32 %v579, %v599
    %v612 = vsub.f32 %v580, %v602
    %v613 = vsub.f32 %v581, %v605
    %v614 = vmul.f32 %v606, 1.442695
    %v615 = vpow.pop %v614
    %v616 = vmul.f32 %v607, 1.442695
    %v617 = vpow.pop %v616
    %v618 = vmul.f32 %v608, 1.442695
    %v619 = vpow.pop %v618
    %v620 = vmul.f32 %v609, 1.442695
    %v621 = vpow.pop %v620
    %v622 = vmul.f32 %v610, 1.442695
    %v623 = vpow.pop %v622
    %v624 = vmul.f32 %v611, 1.442695
    %v625 = vpow.pop %v624
    %v626 = vmul.f32 %v612, 1.442695
    %v627 = vpow.pop %v626
    %v628 = vmul.f32 %v613, 1.442695
    %v629 = vpow.pop %v628
    %v630 = vsel %vm164, %v615, 0.0
    %631 = vadd.xlane.f32.xlu0 %v630
    %v632 = vpop.xlane.xlu0 %631
    %v633 = vsel %vm164, %v617, 0.0
    %634 = vadd.xlane.f32.xlu0 %v633
    %v635 = vpop.xlane.xlu0 %634
    %v636 = vsel %vm164, %v619, 0.0
    %637 = vadd.xlane.f32.xlu0 %v636
    %v638 = vpop.xlane.xlu0 %637
    %v639 = vsel %vm164, %v621, 0.0
    %640 = vadd.xlane.f32.xlu0 %v639
    %v641 = vpop.xlane.xlu0 %640
    %v642 = vsel %vm164, %v623, 0.0
    %643 = vadd.xlane.f32.xlu0 %v642
    %v644 = vpop.xlane.xlu0 %643
    %v645 = vsel %vm164, %v625, 0.0
    %646 = vadd.xlane.f32.xlu0 %v645
    %v647 = vpop.xlane.xlu0 %646
    %v648 = vsel %vm164, %v627, 0.0
    %649 = vadd.xlane.f32.xlu0 %v648
    %v650 = vpop.xlane.xlu0 %649
    %v651 = vsel %vm164, %v629, 0.0
    %652 = vadd.xlane.f32.xlu0 %v651
    %v653 = vpop.xlane.xlu0 %652
    %v654 = vrcp.pop %v632
    %v655 = vmul.f32 %v615, %v654
    %v656 = vrcp.pop %v635
    %v657 = vmul.f32 %v617, %v656
    %v658 = vrcp.pop %v638
    %v659 = vmul.f32 %v619, %v658
    %v660 = vrcp.pop %v641
    %v661 = vmul.f32 %v621, %v660
    %v662 = vrcp.pop %v644
    %v663 = vmul.f32 %v623, %v662
    %v664 = vrcp.pop %v647
    %v665 = vmul.f32 %v625, %v664
    %v666 = vrcp.pop %v650
    %v667 = vmul.f32 %v627, %v666
    %v668 = vrcp.pop %v653
    %v669 = vmul.f32 %v629, %v668
    %v670 = vpack.c.bf16 %v655, %v655
    %v671 = vpack.c.bf16 %v657, %v657
    %v672 = vpack.c.bf16 %v659, %v659
    %v673 = vpack.c.bf16 %v661, %v661
    %v674 = vpack.c.bf16 %v663, %v663
    %v675 = vpack.c.bf16 %v665, %v665
    %v676 = vpack.c.bf16 %v667, %v667
    %v677 = vpack.c.bf16 %v669, %v669
    %v679 = vsel %vm164, %v670, 0
    %v682 = vsel %vm82, %v151, 0
    %684 = vmatprep.subr.bf16.mxu0 0
    %685 = vmatpush1.bf16.msra.mxu0 %v682
    %686 = vmatprep.subr.bf16.mxu0 0
    %687 = vmatpush1.bf16.msra.mxu0 0
    %688 = vmatprep.subr.bf16.mxu0 0
    %689 = vmatpush1.bf16.msra.mxu0 0
    %690 = vmatprep.subr.bf16.mxu0 0
    %691 = vmatpush1.bf16.msra.mxu0 0
    %692 = vmatprep.subr.bf16.mxu0 0
    %693 = vmatpush1.bf16.msra.mxu0 0
    %694 = vmatprep.subr.bf16.mxu0 0
    %695 = vmatpush1.bf16.msra.mxu0 0
    %696 = vmatprep.subr.bf16.mxu0 0
    %697 = vmatpush1.bf16.msra.mxu0 0
    %698 = vmatprep.subr.bf16.mxu0 0
    %699 = vmatpush1.bf16.msra.mxu0 0
    %700 = vmatprep.subr.bf16.mxu0 0
    %701 = vmatpush1.bf16.msra.mxu0 0
    %702 = vmatprep.subr.bf16.mxu0 0
    %703 = vmatpush1.bf16.msra.mxu0 0
    %704 = vmatprep.subr.bf16.mxu0 0
    %705 = vmatpush1.bf16.msra.mxu0 0
    %706 = vmatprep.subr.bf16.mxu0 0
    %707 = vmatpush1.bf16.msra.mxu0 0
    %708 = vmatprep.subr.bf16.mxu0 0
    %709 = vmatpush1.bf16.msra.mxu0 0
    %710 = vmatprep.subr.bf16.mxu0 0
    %711 = vmatpush1.bf16.msra.mxu0 0
    %712 = vmatprep.subr.bf16.mxu0 0
    %713 = vmatpush1.bf16.msra.mxu0 0
    %714 = vmatprep.subr.bf16.mxu0 0
    %715 = vmatpush1.bf16.msra.mxu0 0
    %716 = vmatprep.mubr.bf16.mxu0 0
    %717 = vmatmul.mubr.bf16.gmra.mrb[0].mxu0 %v679
    %v718 = vpop.f32.mrb[0].mxu0
    %v719 = vadd.f32 0.0, %v718
    %v720 = vpop.f32.mrb[0].mxu0
    %v721 = vpop.f32.mrb[0].mxu0
    %v722 = vpop.f32.mrb[0].mxu0
    %723 = vdwg.mxu0
    %v725 = vsel %vm164, %v671, 0
    %v728 = vsel %vm82, %v152, 0
    %730 = vmatprep.subr.bf16.mxu0 0
    %731 = vmatpush1.bf16.msra.mxu0 %v728
    %732 = vmatprep.subr.bf16.mxu0 0
    %733 = vmatpush1.bf16.msra.mxu0 0
    %734 = vmatprep.subr.bf16.mxu0 0
    %735 = vmatpush1.bf16.msra.mxu0 0
    %736 = vmatprep.subr.bf16.mxu0 0
    %737 = vmatpush1.bf16.msra.mxu0 0
    %738 = vmatprep.subr.bf16.mxu0 0
    %739 = vmatpush1.bf16.msra.mxu0 0
    %740 = vmatprep.subr.bf16.mxu0 0
    %741 = vmatpush1.bf16.msra.mxu0 0
    %742 = vmatprep.subr.bf16.mxu0 0
    %743 = vmatpush1.bf16.msra.mxu0 0
    %744 = vmatprep.subr.bf16.mxu0 0
    %745 = vmatpush1.bf16.msra.mxu0 0
    %746 = vmatprep.subr.bf16.mxu0 0
    %747 = vmatpush1.bf16.msra.mxu0 0
    %748 = vmatprep.subr.bf16.mxu0 0
    %749 = vmatpush1.bf16.msra.mxu0 0
    %750 = vmatprep.subr.bf16.mxu0 0
    %751 = vmatpush1.bf16.msra.mxu0 0
    %752 = vmatprep.subr.bf16.mxu0 0
    %753 = vmatpush1.bf16.msra.mxu0 0
    %754 = vmatprep.subr.bf16.mxu0 0
    %755 = vmatpush1.bf16.msra.mxu0 0
    %756 = vmatprep.subr.bf16.mxu0 0
    %757 = vmatpush1.bf16.msra.mxu0 0
    %758 = vmatprep.subr.bf16.mxu0 0
    %759 = vmatpush1.bf16.msra.mxu0 0
    %760 = vmatprep.subr.bf16.mxu0 0
    %761 = vmatpush1.bf16.msra.mxu0 0
    %762 = vmatprep.mubr.bf16.mxu0 0
    %763 = vmatmul.mubr.bf16.gmra.mrb[0].mxu0 %v725
    %v764 = vpop.f32.mrb[0].mxu0
    %v765 = vadd.f32 0.0, %v764
    %v766 = vpop.f32.mrb[0].mxu0
    %v767 = vpop.f32.mrb[0].mxu0
    %v768 = vpop.f32.mrb[0].mxu0
    %769 = vdwg.mxu0
    %v771 = vsel %vm164, %v672, 0
    %v774 = vsel %vm82, %v153, 0
    %776 = vmatprep.subr.bf16.mxu0 0
    %777 = vmatpush1.bf16.msra.mxu0 %v774
    %778 = vmatprep.subr.bf16.mxu0 0
    %779 = vmatpush1.bf16.msra.mxu0 0
    %780 = vmatprep.subr.bf16.mxu0 0
    %781 = vmatpush1.bf16.msra.mxu0 0
    %782 = vmatprep.subr.bf16.mxu0 0
    %783 = vmatpush1.bf16.msra.mxu0 0
    %784 = vmatprep.subr.bf16.mxu0 0
    %785 = vmatpush1.bf16.msra.mxu0 0
    %786 = vmatprep.subr.bf16.mxu0 0
    %787 = vmatpush1.bf16.msra.mxu0 0
    %788 = vmatprep.subr.bf16.mxu0 0
    %789 = vmatpush1.bf16.msra.mxu0 0
    %790 = vmatprep.subr.bf16.mxu0 0
    %791 = vmatpush1.bf16.msra.mxu0 0
    %792 = vmatprep.subr.bf16.mxu0 0
    %793 = vmatpush1.bf16.msra.mxu0 0
    %794 = vmatprep.subr.bf16.mxu0 0
    %795 = vmatpush1.bf16.msra.mxu0 0
    %796 = vmatprep.subr.bf16.mxu0 0
    %797 = vmatpush1.bf16.msra.mxu0 0
    %798 = vmatprep.subr.bf16.mxu0 0
    %799 = vmatpush1.bf16.msra.mxu0 0
    %800 = vmatprep.subr.bf16.mxu0 0
    %801 = vmatpush1.bf16.msra.mxu0 0
    %802 = vmatprep.subr.bf16.mxu0 0
    %803 = vmatpush1.bf16.msra.mxu0 0
    %804 = vmatprep.subr.bf16.mxu0 0
    %805 = vmatpush1.bf16.msra.mxu0 0
    %806 = vmatprep.subr.bf16.mxu0 0
    %807 = vmatpush1.bf16.msra.mxu0 0
    %808 = vmatprep.mubr.bf16.mxu0 0
    %809 = vmatmul.mubr.bf16.gmra.mrb[0].mxu0 %v771
    %v810 = vpop.f32.mrb[0].mxu0
    %v811 = vadd.f32 0.0, %v810
    %v812 = vpop.f32.mrb[0].mxu0
    %v813 = vpop.f32.mrb[0].mxu0
    %v814 = vpop.f32.mrb[0].mxu0
    %815 = vdwg.mxu0
    %v817 = vsel %vm164, %v673, 0
    %v820 = vsel %vm82, %v154, 0
    %822 = vmatprep.subr.bf16.mxu0 0
    %823 = vmatpush1.bf16.msra.mxu0 %v820
    %824 = vmatprep.subr.bf16.mxu0 0
    %825 = vmatpush1.bf16.msra.mxu0 0
    %826 = vmatprep.subr.bf16.mxu0 0
    %827 = vmatpush1.bf16.msra.mxu0 0
    %828 = vmatprep.subr.bf16.mxu0 0
    %829 = vmatpush1.bf16.msra.mxu0 0
    %830 = vmatprep.subr.bf16.mxu0 0
    %831 = vmatpush1.bf16.msra.mxu0 0
    %832 = vmatprep.subr.bf16.mxu0 0
    %833 = vmatpush1.bf16.msra.mxu0 0
    %834 = vmatprep.subr.bf16.mxu0 0
    %835 = vmatpush1.bf16.msra.mxu0 0
    %836 = vmatprep.subr.bf16.mxu0 0
    %837 = vmatpush1.bf16.msra.mxu0 0
    %838 = vmatprep.subr.bf16.mxu0 0
    %839 = vmatpush1.bf16.msra.mxu0 0
    %840 = vmatprep.subr.bf16.mxu0 0
    %841 = vmatpush1.bf16.msra.mxu0 0
    %842 = vmatprep.subr.bf16.mxu0 0
    %843 = vmatpush1.bf16.msra.mxu0 0
    %844 = vmatprep.subr.bf16.mxu0 0
    %845 = vmatpush1.bf16.msra.mxu0 0
    %846 = vmatprep.subr.bf16.mxu0 0
    %847 = vmatpush1.bf16.msra.mxu0 0
    %848 = vmatprep.subr.bf16.mxu0 0
    %849 = vmatpush1.bf16.msra.mxu0 0
    %850 = vmatprep.subr.bf16.mxu0 0
    %851 = vmatpush1.bf16.msra.mxu0 0
    %852 = vmatprep.subr.bf16.mxu0 0
    %853 = vmatpush1.bf16.msra.mxu0 0
    %854 = vmatprep.mubr.bf16.mxu0 0
    %855 = vmatmul.mubr.bf16.gmra.mrb[0].mxu0 %v817
    %v856 = vpop.f32.mrb[0].mxu0
    %v857 = vadd.f32 0.0, %v856
    %v858 = vpop.f32.mrb[0].mxu0
    %v859 = vpop.f32.mrb[0].mxu0
    %v860 = vpop.f32.mrb[0].mxu0
    %861 = vdwg.mxu0
    %v863 = vsel %vm164, %v674, 0
    %v866 = vsel %vm82, %v155, 0
    %868 = vmatprep.subr.bf16.mxu0 0
    %869 = vmatpush1.bf16.msra.mxu0 %v866
    %870 = vmatprep.subr.bf16.mxu0 0
    %871 = vmatpush1.bf16.msra.mxu0 0
    %872 = vmatprep.subr.bf16.mxu0 0
    %873 = vmatpush1.bf16.msra.mxu0 0
    %874 = vmatprep.subr.bf16.mxu0 0
    %875 = vmatpush1.bf16.msra.mxu0 0
    %876 = vmatprep.subr.bf16.mxu0 0
    %877 = vmatpush1.bf16.msra.mxu0 0
    %878 = vmatprep.subr.bf16.mxu0 0
    %879 = vmatpush1.bf16.msra.mxu0 0
    %880 = vmatprep.subr.bf16.mxu0 0
    %881 = vmatpush1.bf16.msra.mxu0 0
    %882 = vmatprep.subr.bf16.mxu0 0
    %883 = vmatpush1.bf16.msra.mxu0 0
    %884 = vmatprep.subr.bf16.mxu0 0
    %885 = vmatpush1.bf16.msra.mxu0 0
    %886 = vmatprep.subr.bf16.mxu0 0
    %887 = vmatpush1.bf16.msra.mxu0 0
    %888 = vmatprep.subr.bf16.mxu0 0
    %889 = vmatpush1.bf16.msra.mxu0 0
    %890 = vmatprep.subr.bf16.mxu0 0
    %891 = vmatpush1.bf16.msra.mxu0 0
    %892 = vmatprep.subr.bf16.mxu0 0
    %893 = vmatpush1.bf16.msra.mxu0 0
    %894 = vmatprep.subr.bf16.mxu0 0
    %895 = vmatpush1.bf16.msra.mxu0 0
    %896 = vmatprep.subr.bf16.mxu0 0
    %897 = vmatpush1.bf16.msra.mxu0 0
    %898 = vmatprep.subr.bf16.mxu0 0
    %899 = vmatpush1.bf16.msra.mxu0 0
    %900 = vmatprep.mubr.bf16.mxu0 0
    %901 = vmatmul.mubr.bf16.gmra.mrb[0].mxu0 %v863
    %v902 = vpop.f32.mrb[0].mxu0
    %v903 = vadd.f32 0.0, %v902
    %v904 = vpop.f32.mrb[0].mxu0
    %v905 = vpop.f32.mrb[0].mxu0
    %v906 = vpop.f32.mrb[0].mxu0
    %907 = vdwg.mxu0
    %v909 = vsel %vm164, %v675, 0
    %v912 = vsel %vm82, %v156, 0
    %914 = vmatprep.subr.bf16.mxu0 0
    %915 = vmatpush1.bf16.msra.mxu0 %v912
    %916 = vmatprep.subr.bf16.mxu0 0
    %917 = vmatpush1.bf16.msra.mxu0 0
    %918 = vmatprep.subr.bf16.mxu0 0
    %919 = vmatpush1.bf16.msra.mxu0 0
    %920 = vmatprep.subr.bf16.mxu0 0
    %921 = vmatpush1.bf16.msra.mxu0 0
    %922 = vmatprep.subr.bf16.mxu0 0
    %923 = vmatpush1.bf16.msra.mxu0 0
    %924 = vmatprep.subr.bf16.mxu0 0
    %925 = vmatpush1.bf16.msra.mxu0 0
    %926 = vmatprep.subr.bf16.mxu0 0
    %927 = vmatpush1.bf16.msra.mxu0 0
    %928 = vmatprep.subr.bf16.mxu0 0
    %929 = vmatpush1.bf16.msra.mxu0 0
    %930 = vmatprep.subr.bf16.mxu0 0
    %931 = vmatpush1.bf16.msra.mxu0 0
    %932 = vmatprep.subr.bf16.mxu0 0
    %933 = vmatpush1.bf16.msra.mxu0 0
    %934 = vmatprep.subr.bf16.mxu0 0
    %935 = vmatpush1.bf16.msra.mxu0 0
    %936 = vmatprep.subr.bf16.mxu0 0
    %937 = vmatpush1.bf16.msra.mxu0 0
    %938 = vmatprep.subr.bf16.mxu0 0
    %939 = vmatpush1.bf16.msra.mxu0 0
    %940 = vmatprep.subr.bf16.mxu0 0
    %941 = vmatpush1.bf16.msra.mxu0 0
    %942 = vmatprep.subr.bf16.mxu0 0
    %943 = vmatpush1.bf16.msra.mxu0 0
    %944 = vmatprep.subr.bf16.mxu0 0
    %945 = vmatpush1.bf16.msra.mxu0 0
    %946 = vmatprep.mubr.bf16.mxu0 0
    %947 = vmatmul.mubr.bf16.gmra.mrb[0].mxu0 %v909
    %v948 = vpop.f32.mrb[0].mxu0
    %v949 = vadd.f32 0.0, %v948
    %v950 = vpop.f32.mrb[0].mxu0
    %v951 = vpop.f32.mrb[0].mxu0
    %v952 = vpop.f32.mrb[0].mxu0
    %953 = vdwg.mxu0
    %v955 = vsel %vm164, %v676, 0
    %v958 = vsel %vm82, %v157, 0
    %960 = vmatprep.subr.bf16.mxu0 0
    %961 = vmatpush1.bf16.msra.mxu0 %v958
    %962 = vmatprep.subr.bf16.mxu0 0
    %963 = vmatpush1.bf16.msra.mxu0 0
    %964 = vmatprep.subr.bf16.mxu0 0
    %965 = vmatpush1.bf16.msra.mxu0 0
    %966 = vmatprep.subr.bf16.mxu0 0
    %967 = vmatpush1.bf16.msra.mxu0 0
    %968 = vmatprep.subr.bf16.mxu0 0
    %969 = vmatpush1.bf16.msra.mxu0 0
    %970 = vmatprep.subr.bf16.mxu0 0
    %971 = vmatpush1.bf16.msra.mxu0 0
    %972 = vmatprep.subr.bf16.mxu0 0
    %973 = vmatpush1.bf16.msra.mxu0 0
    %974 = vmatprep.subr.bf16.mxu0 0
    %975 = vmatpush1.bf16.msra.mxu0 0
    %976 = vmatprep.subr.bf16.mxu0 0
    %977 = vmatpush1.bf16.msra.mxu0 0
    %978 = vmatprep.subr.bf16.mxu0 0
    %979 = vmatpush1.bf16.msra.mxu0 0
    %980 = vmatprep.subr.bf16.mxu0 0
    %981 = vmatpush1.bf16.msra.mxu0 0
    %982 = vmatprep.subr.bf16.mxu0 0
    %983 = vmatpush1.bf16.msra.mxu0 0
    %984 = vmatprep.subr.bf16.mxu0 0
    %985 = vmatpush1.bf16.msra.mxu0 0
    %986 = vmatprep.subr.bf16.mxu0 0
    %987 = vmatpush1.bf16.msra.mxu0 0
    %988 = vmatprep.subr.bf16.mxu0 0
    %989 = vmatpush1.bf16.msra.mxu0 0
    %990 = vmatprep.subr.bf16.mxu0 0
    %991 = vmatpush1.bf16.msra.mxu0 0
    %992 = vmatprep.mubr.bf16.mxu0 0
    %993 = vmatmul.mubr.bf16.gmra.mrb[0].mxu0 %v955
    %v994 = vpop.f32.mrb[0].mxu0
    %v995 = vadd.f32 0.0, %v994
    %v996 = vpop.f32.mrb[0].mxu0
    %v997 = vpop.f32.mrb[0].mxu0
    %v998 = vpop.f32.mrb[0].mxu0
    %999 = vdwg.mxu0
    %v1001 = vsel %vm164, %v677, 0
    %v1004 = vsel %vm82, %v158, 0
    %1006 = vmatprep.subr.bf16.mxu0 0
    %1007 = vmatpush1.bf16.msra.mxu0 %v1004
    %1008 = vmatprep.subr.bf16.mxu0 0
    %1009 = vmatpush1.bf16.msra.mxu0 0
    %1010 = vmatprep.subr.bf16.mxu0 0
    %1011 = vmatpush1.bf16.msra.mxu0 0
    %1012 = vmatprep.subr.bf16.mxu0 0
    %1013 = vmatpush1.bf16.msra.mxu0 0
    %1014 = vmatprep.subr.bf16.mxu0 0
    %1015 = vmatpush1.bf16.msra.mxu0 0
    %1016 = vmatprep.subr.bf16.mxu0 0
    %1017 = vmatpush1.bf16.msra.mxu0 0
    %1018 = vmatprep.subr.bf16.mxu0 0
    %1019 = vmatpush1.bf16.msra.mxu0 0
    %1020 = vmatprep.subr.bf16.mxu0 0
    %1021 = vmatpush1.bf16.msra.mxu0 0
    %1022 = vmatprep.subr.bf16.mxu0 0
    %1023 = vmatpush1.bf16.msra.mxu0 0
    %1024 = vmatprep.subr.bf16.mxu0 0
    %1025 = vmatpush1.bf16.msra.mxu0 0
    %1026 = vmatprep.subr.bf16.mxu0 0
    %1027 = vmatpush1.bf16.msra.mxu0 0
    %1028 = vmatprep.subr.bf16.mxu0 0
    %1029 = vmatpush1.bf16.msra.mxu0 0
    %1030 = vmatprep.subr.bf16.mxu0 0
    %1031 = vmatpush1.bf16.msra.mxu0 0
    %1032 = vmatprep.subr.bf16.mxu0 0
    %1033 = vmatpush1.bf16.msra.mxu0 0
    %1034 = vmatprep.subr.bf16.mxu0 0
    %1035 = vmatpush1.bf16.msra.mxu0 0
    %1036 = vmatprep.subr.bf16.mxu0 0
    %1037 = vmatpush1.bf16.msra.mxu0 0
    %1038 = vmatprep.mubr.bf16.mxu0 0
    %1039 = vmatmul.mubr.bf16.gmra.mrb[0].mxu0 %v1001
    %v1040 = vpop.f32.mrb[0].mxu0
    %v1041 = vadd.f32 0.0, %v1040
    %v1042 = vpop.f32.mrb[0].mxu0
    %v1043 = vpop.f32.mrb[0].mxu0
    %v1044 = vpop.f32.mrb[0].mxu0
    %1045 = vdwg.mxu0
    %v1046 = vpack.c.bf16 %v765, %v719
    %v1047 = vpack.c.bf16 %v857, %v811
    %v1048 = vpack.c.bf16 %v949, %v903
    %v1049 = vpack.c.bf16 %v1041, %v995
    %v1051 = vsel %vm164, %v1046, 0
    %v1054 = vsel %vm82, %v28, 0
    %1056 = vmatprep.subr.bf16.mxu0 0
    %1057 = vmatpush1.bf16.msra.mxu0 %v1054
    %1058 = vmatprep.subr.bf16.mxu0 0
    %1059 = vmatpush1.bf16.msra.mxu0 0
    %1060 = vmatprep.subr.bf16.mxu0 0
    %1061 = vmatpush1.bf16.msra.mxu0 0
    %1062 = vmatprep.subr.bf16.mxu0 0
    %1063 = vmatpush1.bf16.msra.mxu0 0
    %1064 = vmatprep.subr.bf16.mxu0 0
    %1065 = vmatpush1.bf16.msra.mxu0 0
    %1066 = vmatprep.subr.bf16.mxu0 0
    %1067 = vmatpush1.bf16.msra.mxu0 0
    %1068 = vmatprep.subr.bf16.mxu0 0
    %1069 = vmatpush1.bf16.msra.mxu0 0
    %1070 = vmatprep.subr.bf16.mxu0 0
    %1071 = vmatpush1.bf16.msra.mxu0 0
    %1072 = vmatprep.subr.bf16.mxu0 0
    %1073 = vmatpush1.bf16.msra.mxu0 0
    %1074 = vmatprep.subr.bf16.mxu0 0
    %1075 = vmatpush1.bf16.msra.mxu0 0
    %1076 = vmatprep.subr.bf16.mxu0 0
    %1077 = vmatpush1.bf16.msra.mxu0 0
    %1078 = vmatprep.subr.bf16.mxu0 0
    %1079 = vmatpush1.bf16.msra.mxu0 0
    %1080 = vmatprep.subr.bf16.mxu0 0
    %1081 = vmatpush1.bf16.msra.mxu0 0
    %1082 = vmatprep.subr.bf16.mxu0 0
    %1083 = vmatpush1.bf16.msra.mxu0 0
    %1084 = vmatprep.subr.bf16.mxu0 0
    %1085 = vmatpush1.bf16.msra.mxu0 0
    %1086 = vmatprep.subr.bf16.mxu0 0
    %1087 = vmatpush1.bf16.msra.mxu0 0
    %1088 = vmatprep.mubr.bf16.mxu0 0
    %1089 = vmatmul.mubr.bf16.gmra.mrb[0].mxu0 %v1051
    %v1090 = vpop.f32.mrb[0].mxu0
    %v1091 = vadd.f32 0.0, %v1090
    %v1092 = vpop.f32.mrb[0].mxu0
    %v1093 = vpop.f32.mrb[0].mxu0
    %v1094 = vadd.f32 0.0, %v1093
    %v1095 = vpop.f32.mrb[0].mxu0
    %1096 = vdwg.mxu0
    %v1098 = vsel %vm164, %v1047, 0
    %v1101 = vsel %vm82, %v29, 0
    %1103 = vmatprep.subr.bf16.mxu0 0
    %1104 = vmatpush1.bf16.msra.mxu0 %v1101
    %1105 = vmatprep.subr.bf16.mxu0 0
    %1106 = vmatpush1.bf16.msra.mxu0 0
    %1107 = vmatprep.subr.bf16.mxu0 0
    %1108 = vmatpush1.bf16.msra.mxu0 0
    %1109 = vmatprep.subr.bf16.mxu0 0
    %1110 = vmatpush1.bf16.msra.mxu0 0
    %1111 = vmatprep.subr.bf16.mxu0 0
    %1112 = vmatpush1.bf16.msra.mxu0 0
    %1113 = vmatprep.subr.bf16.mxu0 0
    %1114 = vmatpush1.bf16.msra.mxu0 0
    %1115 = vmatprep.subr.bf16.mxu0 0
    %1116 = vmatpush1.bf16.msra.mxu0 0
    %1117 = vmatprep.subr.bf16.mxu0 0
    %1118 = vmatpush1.bf16.msra.mxu0 0
    %1119 = vmatprep.subr.bf16.mxu0 0
    %1120 = vmatpush1.bf16.msra.mxu0 0
    %1121 = vmatprep.subr.bf16.mxu0 0
    %1122 = vmatpush1.bf16.msra.mxu0 0
    %1123 = vmatprep.subr.bf16.mxu0 0
    %1124 = vmatpush1.bf16.msra.mxu0 0
    %1125 = vmatprep.subr.bf16.mxu0 0
    %1126 = vmatpush1.bf16.msra.mxu0 0
    %1127 = vmatprep.subr.bf16.mxu0 0
    %1128 = vmatpush1.bf16.msra.mxu0 0
    %1129 = vmatprep.subr.bf16.mxu0 0
    %1130 = vmatpush1.bf16.msra.mxu0 0
    %1131 = vmatprep.subr.bf16.mxu0 0
    %1132 = vmatpush1.bf16.msra.mxu0 0
    %1133 = vmatprep.subr.bf16.mxu0 0
    %1134 = vmatpush1.bf16.msra.mxu0 0
    %1135 = vmatprep.mubr.bf16.mxu0 0
    %1136 = vmatmul.mubr.bf16.gmra.mrb[0].mxu0 %v1098
    %v1137 = vpop.f32.mrb[0].mxu0
    %v1138 = vadd.f32 0.0, %v1137
    %v1139 = vpop.f32.mrb[0].mxu0
    %v1140 = vpop.f32.mrb[0].mxu0
    %v1141 = vadd.f32 0.0, %v1140
    %v1142 = vpop.f32.mrb[0].mxu0
    %1143 = vdwg.mxu0
    %v1145 = vsel %vm164, %v1048, 0
    %v1148 = vsel %vm82, %v30, 0
    %1150 = vmatprep.subr.bf16.mxu0 0
    %1151 = vmatpush1.bf16.msra.mxu0 %v1148
    %1152 = vmatprep.subr.bf16.mxu0 0
    %1153 = vmatpush1.bf16.msra.mxu0 0
    %1154 = vmatprep.subr.bf16.mxu0 0
    %1155 = vmatpush1.bf16.msra.mxu0 0
    %1156 = vmatprep.subr.bf16.mxu0 0
    %1157 = vmatpush1.bf16.msra.mxu0 0
    %1158 = vmatprep.subr.bf16.mxu0 0
    %1159 = vmatpush1.bf16.msra.mxu0 0
    %1160 = vmatprep.subr.bf16.mxu0 0
    %1161 = vmatpush1.bf16.msra.mxu0 0
    %1162 = vmatprep.subr.bf16.mxu0 0
    %1163 = vmatpush1.bf16.msra.mxu0 0
    %1164 = vmatprep.subr.bf16.mxu0 0
    %1165 = vmatpush1.bf16.msra.mxu0 0
    %1166 = vmatprep.subr.bf16.mxu0 0
    %1167 = vmatpush1.bf16.msra.mxu0 0
    %1168 = vmatprep.subr.bf16.mxu0 0
    %1169 = vmatpush1.bf16.msra.mxu0 0
    %1170 = vmatprep.subr.bf16.mxu0 0
    %1171 = vmatpush1.bf16.msra.mxu0 0
    %1172 = vmatprep.subr.bf16.mxu0 0
    %1173 = vmatpush1.bf16.msra.mxu0 0
    %1174 = vmatprep.subr.bf16.mxu0 0
    %1175 = vmatpush1.bf16.msra.mxu0 0
    %1176 = vmatprep.subr.bf16.mxu0 0
    %1177 = vmatpush1.bf16.msra.mxu0 0
    %1178 = vmatprep.subr.bf16.mxu0 0
    %1179 = vmatpush1.bf16.msra.mxu0 0
    %1180 = vmatprep.subr.bf16.mxu0 0
    %1181 = vmatpush1.bf16.msra.mxu0 0
    %1182 = vmatprep.mubr.bf16.mxu0 0
    %1183 = vmatmul.mubr.bf16.gmra.mrb[0].mxu0 %v1145
    %v1184 = vpop.f32.mrb[0].mxu0
    %v1185 = vadd.f32 0.0, %v1184
    %v1186 = vpop.f32.mrb[0].mxu0
    %v1187 = vpop.f32.mrb[0].mxu0
    %v1188 = vadd.f32 0.0, %v1187
    %v1189 = vpop.f32.mrb[0].mxu0
    %1190 = vdwg.mxu0
    %v1192 = vsel %vm164, %v1049, 0
    %v1195 = vsel %vm82, %v31, 0
    %1197 = vmatprep.subr.bf16.mxu0 0
    %1198 = vmatpush1.bf16.msra.mxu0 %v1195
    %1199 = vmatprep.subr.bf16.mxu0 0
    %1200 = vmatpush1.bf16.msra.mxu0 0
    %1201 = vmatprep.subr.bf16.mxu0 0
    %1202 = vmatpush1.bf16.msra.mxu0 0
    %1203 = vmatprep.subr.bf16.mxu0 0
    %1204 = vmatpush1.bf16.msra.mxu0 0
    %1205 = vmatprep.subr.bf16.mxu0 0
    %1206 = vmatpush1.bf16.msra.mxu0 0
    %1207 = vmatprep.subr.bf16.mxu0 0
    %1208 = vmatpush1.bf16.msra.mxu0 0
    %1209 = vmatprep.subr.bf16.mxu0 0
    %1210 = vmatpush1.bf16.msra.mxu0 0
    %1211 = vmatprep.subr.bf16.mxu0 0
    %1212 = vmatpush1.bf16.msra.mxu0 0
    %1213 = vmatprep.subr.bf16.mxu0 0
    %1214 = vmatpush1.bf16.msra.mxu0 0
    %1215 = vmatprep.subr.bf16.mxu0 0
    %1216 = vmatpush1.bf16.msra.mxu0 0
    %1217 = vmatprep.subr.bf16.mxu0 0
    %1218 = vmatpush1.bf16.msra.mxu0 0
    %1219 = vmatprep.subr.bf16.mxu0 0
    %1220 = vmatpush1.bf16.msra.mxu0 0
    %1221 = vmatprep.subr.bf16.mxu0 0
    %1222 = vmatpush1.bf16.msra.mxu0 0
    %1223 = vmatprep.subr.bf16.mxu0 0
    %1224 = vmatpush1.bf16.msra.mxu0 0
    %1225 = vmatprep.subr.bf16.mxu0 0
    %1226 = vmatpush1.bf16.msra.mxu0 0
    %1227 = vmatprep.subr.bf16.mxu0 0
    %1228 = vmatpush1.bf16.msra.mxu0 0
    %1229 = vmatprep.mubr.bf16.mxu0 0
    %1230 = vmatmul.mubr.bf16.gmra.mrb[0].mxu0 %v1192
    %v1231 = vpop.f32.mrb[0].mxu0
    %v1232 = vadd.f32 0.0, %v1231
    %v1233 = vpop.f32.mrb[0].mxu0
    %v1234 = vpop.f32.mrb[0].mxu0
    %v1235 = vadd.f32 0.0, %v1234
    %v1236 = vpop.f32.mrb[0].mxu0
    %1237 = vdwg.mxu0
    %vm1238 = vcmask 261120
    %v1239 = vsel %vm1238, %v1091, 0.0
    %v1240 = vsel %vm1238, %v1138, 0.0
    %v1241 = vadd.f32 %v1239, %v1240
    %v1242 = vsel %vm1238, %v1185, 0.0
    %v1243 = vadd.f32 %v1241, %v1242
    %v1244 = vsel %vm1238, %v1232, 0.0
    %v1245 = vadd.f32 %v1243, %v1244
    %v1246 = vsel %vm1238, %v1094, 0.0
    %v1247 = vsel %vm1238, %v1141, 0.0
    %v1248 = vadd.f32 %v1246, %v1247
    %v1249 = vsel %vm1238, %v1188, 0.0
    %v1250 = vadd.f32 %v1248, %v1249
    %v1251 = vsel %vm1238, %v1235, 0.0
    %v1252 = vadd.f32 %v1250, %v1251
    %v1253 = vlaneseq
    %v1254 = vshrl.u32 %v1253, 7
    %v1255 = vsub.s32 0, %v1254
    %v1256 = vrot.slane %v50, %v1255
    %v1257 = vadd.f32 %v1245, %v1256
    %v1258 = vadd.f32 %v1252, %v1256
    %v1259 = vld [vmem:[%s1] sm:$0xff]
    %v1260 = vld [vmem:[%s1 + $0x8] sm:$0xff]
    %v1261 = vadd.f32 %v1257, %v1259
    %v1262 = vadd.f32 %v1258, %v1260
    %v1263 = vsel %vm1238, %v1261, 0.0
    %1264 = vadd.xlane.f32.xlu0 %v1263
    %v1265 = vpop.xlane.xlu0 %1264
    %v1266 = vsel %vm1238, %v1262, 0.0
    %1267 = vadd.xlane.f32.xlu0 %v1266
    %v1268 = vpop.xlane.xlu0 %1267
    %v1269 = vrcp.pop 32.0
    %v1270 = vmul.f32 %v1265, %v1269
    %v1271 = vmul.f32 %v1268, %v1269
    %v1272 = vsub.f32 %v1261, %v1270
    %v1273 = vsub.f32 %v1262, %v1271
    %v1274 = vmul.f32 %v1272, %v1272
    %v1275 = vmul.f32 %v1273, %v1273
    %v1276 = vsel %vm1238, %v1274, 0.0
    %1277 = vadd.xlane.f32.xlu0 %v1276
    %v1278 = vpop.xlane.xlu0 %1277
    %v1279 = vsel %vm1238, %v1275, 0.0
    %1280 = vadd.xlane.f32.xlu0 %v1279
    %v1281 = vpop.xlane.xlu0 %1280
    %v1282 = vmul.f32 %v1278, %v1269
    %v1283 = vmul.f32 %v1281, %v1269
    %v1284 = vadd.f32 %v1282, 1e-05
    %v1285 = vadd.f32 %v1283, 1e-05
    %v1286 = vrsqrt.pop %v1284
    %v1287 = vrsqrt.pop %v1285
    %v1288 = vmul.f32 %v1272, %v1286
    %v1289 = vmul.f32 %v1273, %v1287
    %v1290 = vlaneseq
    %v1291 = vshrl.u32 %v1290, 7
    %v1292 = vsub.s32 0, %v1291
    %v1293 = vrot.slane %v51, %v1292
    %v1294 = vmul.f32 %v1288, %v1293
    %v1295 = vmul.f32 %v1289, %v1293
    %v1296 = vlaneseq
    %v1297 = vshrl.u32 %v1296, 7
    %v1298 = vsub.s32 0, %v1297
    %v1299 = vrot.slane %v52, %v1298
    %v1300 = vadd.f32 %v1294, %v1299
    %v1301 = vadd.f32 %v1295, %v1299
    %v1302 = vpack.c.bf16 %v1301, %v1300
    %v1303 = vlaneseq
    %v1304 = vshrl.u32 %v1303, 7
    %v1305 = vsub.s32 0, %v1304
    %v1306 = vrot.slane %v53, %v1305
    %v1308 = vsel %vm1238, %v1302, 0
    %1310 = vmatprep.subr.bf16.mxu0 0
    %1311 = vmatpush1.bf16.msra.mxu0 %v36
    %1312 = vmatprep.subr.bf16.mxu0 0
    %1313 = vmatpush1.bf16.msra.mxu0 %v37
    %1314 = vmatprep.subr.bf16.mxu0 0
    %1315 = vmatpush1.bf16.msra.mxu0 0
    %1316 = vmatprep.subr.bf16.mxu0 0
    %1317 = vmatpush1.bf16.msra.mxu0 0
    %1318 = vmatprep.subr.bf16.mxu0 0
    %1319 = vmatpush1.bf16.msra.mxu0 0
    %1320 = vmatprep.subr.bf16.mxu0 0
    %1321 = vmatpush1.bf16.msra.mxu0 0
    %1322 = vmatprep.subr.bf16.mxu0 0
    %1323 = vmatpush1.bf16.msra.mxu0 0
    %1324 = vmatprep.subr.bf16.mxu0 0
    %1325 = vmatpush1.bf16.msra.mxu0 0
    %1326 = vmatprep.subr.bf16.mxu0 0
    %1327 = vmatpush1.bf16.msra.mxu0 0
    %1328 = vmatprep.subr.bf16.mxu0 0
    %1329 = vmatpush1.bf16.msra.mxu0 0
    %1330 = vmatprep.subr.bf16.mxu0 0
    %1331 = vmatpush1.bf16.msra.mxu0 0
    %1332 = vmatprep.subr.bf16.mxu0 0
    %1333 = vmatpush1.bf16.msra.mxu0 0
    %1334 = vmatprep.subr.bf16.mxu0 0
    %1335 = vmatpush1.bf16.msra.mxu0 0
    %1336 = vmatprep.subr.bf16.mxu0 0
    %1337 = vmatpush1.bf16.msra.mxu0 0
    %1338 = vmatprep.subr.bf16.mxu0 0
    %1339 = vmatpush1.bf16.msra.mxu0 0
    %1340 = vmatprep.subr.bf16.mxu0 0
    %1341 = vmatpush1.bf16.msra.mxu0 0
    %1342 = vmatprep.mubr.bf16.mxu0 0
    %1343 = vmatmul.mubr.bf16.gmra.mrb[0].mxu0 %v1308
    %v1344 = vpop.f32.mrb[0].mxu0
    %v1345 = vadd.f32 %v1306, %v1344
    %v1346 = vpop.f32.mrb[0].mxu0
    %v1347 = vpop.f32.mrb[0].mxu0
    %v1348 = vadd.f32 %v1306, %v1347
    %v1349 = vpop.f32.mrb[0].mxu0
    %1350 = vdwg.mxu0
    %v1351 = vmax.f32 %v1345, 0.0
    %v1352 = vmax.f32 %v1348, 0.0
    %v1353 = vpack.c.bf16 %v1352, %v1351
    %v1354 = vlaneseq
    %v1355 = vshrl.u32 %v1354, 7
    %v1356 = vsub.s32 0, %v1355
    %v1357 = vrot.slane %v54, %v1356
    %vm1358 = vcmask 523264
    %v1360 = vsel %vm1358, %v1353, 0
    %1362 = vmatprep.subr.bf16.mxu0 0
    %1363 = vmatpush1.bf16.msra.mxu0 %v46
    %1364 = vmatprep.subr.bf16.mxu0 0
    %1365 = vmatpush1.bf16.msra.mxu0 %v47
    %1366 = vmatprep.subr.bf16.mxu0 0
    %1367 = vmatpush1.bf16.msra.mxu0 %v48
    %1368 = vmatprep.subr.bf16.mxu0 0
    %1369 = vmatpush1.bf16.msra.mxu0 %v49
    %1370 = vmatprep.subr.bf16.mxu0 0
    %1371 = vmatpush1.bf16.msra.mxu0 0
    %1372 = vmatprep.subr.bf16.mxu0 0
    %1373 = vmatpush1.bf16.msra.mxu0 0
    %1374 = vmatprep.subr.bf16.mxu0 0
    %1375 = vmatpush1.bf16.msra.mxu0 0
    %1376 = vmatprep.subr.bf16.mxu0 0
    %1377 = vmatpush1.bf16.msra.mxu0 0
    %1378 = vmatprep.subr.bf16.mxu0 0
    %1379 = vmatpush1.bf16.msra.mxu0 0
    %1380 = vmatprep.subr.bf16.mxu0 0
    %1381 = vmatpush1.bf16.msra.mxu0 0
    %1382 = vmatprep.subr.bf16.mxu0 0
    %1383 = vmatpush1.bf16.msra.mxu0 0
    %1384 = vmatprep.subr.bf16.mxu0 0
    %1385 = vmatpush1.bf16.msra.mxu0 0
    %1386 = vmatprep.subr.bf16.mxu0 0
    %1387 = vmatpush1.bf16.msra.mxu0 0
    %1388 = vmatprep.subr.bf16.mxu0 0
    %1389 = vmatpush1.bf16.msra.mxu0 0
    %1390 = vmatprep.subr.bf16.mxu0 0
    %1391 = vmatpush1.bf16.msra.mxu0 0
    %1392 = vmatprep.subr.bf16.mxu0 0
    %1393 = vmatpush1.bf16.msra.mxu0 0
    %1394 = vmatprep.mubr.bf16.mxu0 0
    %1395 = vmatmul.mubr.bf16.gmra.mrb[0].mxu0 %v1360
    %v1396 = vpop.f32.mrb[0].mxu0
    %v1397 = vadd.f32 %v1357, %v1396
    %v1398 = vpop.f32.mrb[0].mxu0
    %v1399 = vpop.f32.mrb[0].mxu0
    %v1400 = vadd.f32 %v1357, %v1399
    %v1401 = vpop.f32.mrb[0].mxu0
    %1402 = vdwg.mxu0
    %v1403 = vadd.f32 %v1397, %v1300
    %v1404 = vadd.f32 %v1400, %v1301
    %v1405 = vsel %vm1238, %v1403, 0.0
    %1406 = vadd.xlane.f32.xlu0 %v1405
    %v1407 = vpop.xlane.xlu0 %1406
    %v1408 = vsel %vm1238, %v1404, 0.0
    %1409 = vadd.xlane.f32.xlu0 %v1408
    %v1410 = vpop.xlane.xlu0 %1409
    %v1411 = vmul.f32 %v1407, %v1269
    %v1412 = vmul.f32 %v1410, %v1269
    %v1413 = vsub.f32 %v1403, %v1411
    %v1414 = vsub.f32 %v1404, %v1412
    %v1415 = vmul.f32 %v1413, %v1413
    %v1416 = vmul.f32 %v1414, %v1414
    %v1417 = vsel %vm1238, %v1415, 0.0
    %1418 = vadd.xlane.f32.xlu0 %v1417
    %v1419 = vpop.xlane.xlu0 %1418
    %v1420 = vsel %vm1238, %v1416, 0.0
    %1421 = vadd.xlane.f32.xlu0 %v1420
    %v1422 = vpop.xlane.xlu0 %1421
    %v1423 = vmul.f32 %v1419, %v1269
    %v1424 = vmul.f32 %v1422, %v1269
    %v1425 = vadd.f32 %v1423, 1e-05
    %v1426 = vadd.f32 %v1424, 1e-05
    %v1427 = vrsqrt.pop %v1425
    %v1428 = vrsqrt.pop %v1426
    %v1429 = vmul.f32 %v1413, %v1427
    %v1430 = vmul.f32 %v1414, %v1428
    %v1431 = vlaneseq
    %v1432 = vshrl.u32 %v1431, 7
    %v1433 = vsub.s32 0, %v1432
    %v1434 = vrot.slane %v55, %v1433
    %v1435 = vmul.f32 %v1429, %v1434
    %v1436 = vmul.f32 %v1430, %v1434
    %v1437 = vlaneseq
    %v1438 = vshrl.u32 %v1437, 7
    %v1439 = vsub.s32 0, %v1438
    %v1440 = vrot.slane %v56, %v1439
    %v1441 = vadd.f32 %v1435, %v1440
    %v1442 = vadd.f32 %v1436, %v1440
    %1443 = vst.msk [vmem:[#allocation2] sm:$0xff] %vm1238, %v1441
    %1444 = vst.msk [vmem:[#allocation2 + $0x8] sm:$0xff] %vm1238, %v1442
    // Predicated region
    $region18: #{transformer_block.1} parent=1 // pred_check
      _
    $region19: #{transformer_block.1} parent=1 // pred_check_branch
      %1446 = sbr.rel (0) target = $region21
    $region20: #{transformer_block.1} parent=1 // pred_region
      %s1448 = ssub.s32 256, 256
      %1449 = vsyncadd [#allocation3], %s1448
      %s1450 = sshll.u32 [#allocation2], 4
      %s1451 = int_to_ptr.vmem [resolvable:$true] %s1450
      %1456 = dma.vmem_to_hbm [thread:$0]  %s1451, 256, %s4, [#allocation3], 128, 128, 8
    $region21: #{transformer_block.1} parent=1 // pred_fallthru
      _
    // Predicated region
    $region22: #{transformer_block.1} parent=1 // pred_check
      _
    $region23: #{transformer_block.1} parent=1 // pred_check_branch
      %1458 = sbr.rel (0) target = $region25
    $region24: #{transformer_block.1} parent=1 // pred_region
      %1459 = dma.done [#allocation3], 256
    $region25: #{transformer_block.1} parent=1 // pred_fallthru
      _
    %1460 = vsyncpa [#allocation3], 1

</llo_original>
